<compile_context>
chip_gen: v7x
topology: tpu7x:2x2x1
jax: 0.10.0
libtpu: 0.0.40
codegen_flags: <defaults>
</compile_context>

<pallas_src>
import functools
import math

import jax
import jax.numpy as jnp
from jax.experimental import pallas as pl
from jax.experimental.pallas import tpu as pltpu


def _bilstm_kernel(xp_ref, whh_ref, out_ref, h_ref, c_ref):
    """Recurrent part of one bidirectional LSTM layer.

    Grid: (direction, time_block).
      xp_ref : (1, Tt, B, 4H) pre-activations (x@W_ih + b_ih + b_hh), gate order i,f,g,o
      whh_ref: (1, H, 4H)     hidden->gate weights for this direction
      out_ref: (1, Tt, B, H)  hidden states for this direction / time block
      h_ref, c_ref: (B, H)    VMEM carries, persist across time blocks
    """
    d = pl.program_id(0)            # 0 = forward, 1 = backward
    tb = pl.program_id(1)

    @pl.when(tb == 0)
    def _():
        h_ref[...] = jnp.zeros_like(h_ref)
        c_ref[...] = jnp.zeros_like(c_ref)

    whh = whh_ref[0]                # (H, 4H)
    Tt = xp_ref.shape[1]
    H = h_ref.shape[1]

    def step(s, carry):
        h, c = carry
        # local time index inside the block: ascending for fwd, descending for bwd
        idx = (1 - d) * s + d * (Tt - 1 - s)
        g = xp_ref[0, idx, :, :] + jnp.dot(h, whh,
                                           preferred_element_type=jnp.float32)
        i = jax.nn.sigmoid(g[:, 0 * H:1 * H])
        f = jax.nn.sigmoid(g[:, 1 * H:2 * H])
        gc = jnp.tanh(g[:, 2 * H:3 * H])
        o = jax.nn.sigmoid(g[:, 3 * H:4 * H])
        c = f * c + i * gc
        h = o * jnp.tanh(c)
        out_ref[0, idx, :, :] = h.astype(out_ref.dtype)
        return (h, c)

    h, c = jax.lax.fori_loop(0, Tt, step, (h_ref[...], c_ref[...]), unroll=True)
    h_ref[...] = h
    c_ref[...] = c


def _pick_time_block(T, max_block=32):
    """Largest divisor of T that is <= max_block (avoids tail masking)."""
    tt = min(T, max_block)
    while T % tt:
        tt -= 1
    return tt


def _project_inputs(parts, w_ih, b_ih, b_hh):
    """Hoisted input projection: one big matmul -> (T, B, 4H) pre-activations.

    parts: list of (T, B, Pk) arrays whose concat along the last dim is the
    layer input (so the fwd/bwd concat between layers is never materialized).
    w_ih: (4H, sum Pk) PyTorch nn.LSTM layout.
    """
    bias = (b_ih + b_hh).astype(jnp.float32)
    acc = None
    off = 0
    for p in parts:
        pk = p.shape[-1]
        w = w_ih[:, off:off + pk]                        # (4H, Pk)
        t = jnp.einsum('tbp,gp->tbg', p, w)              # (T, B, 4H)
        acc = t if acc is None else acc + t
        off += pk
    return acc + bias


def bilstm_decoder_forward(x, params, hid_dim, time_block=32):
    """Forward pass of BiLSTMDecoder.  x: (B, T, in_dim) -> (B, T, 2*hid_dim)."""
    B, T, _ = x.shape
    H = hid_dim
    Tt = _pick_time_block(T, time_block)
    nT = T // Tt

    # time reversal (block level) for the backward direction via index_map
    time_map = lambda d, tb: (d, (1 - d) * tb + d * (nT - 1 - tb), 0, 0)

    parts = [jnp.transpose(x, (1, 0, 2)).astype(jnp.float32)]  # [(T, B, in_dim)]

    out = None
    for layer_p in params:
        # Hoisted, bias-folded input projections (one per direction).
        xp = jnp.stack([_project_inputs(parts, w_ih, b_ih, b_hh)
                        for (w_ih, _w_hh, b_ih, b_hh) in layer_p])      # (2, T, B, 4H)
        whh = jnp.stack([w_hh.T for (_w_ih, w_hh, _b_ih, _b_hh) in layer_p])  # (2, H, 4H)

        out = pl.pallas_call(
            _bilstm_kernel,
            out_shape=jax.ShapeDtypeStruct((2, T, B, H), jnp.float32),
            grid_spec=pltpu.PrefetchScalarGridSpec(
                num_scalar_prefetch=0,
                grid=(2, nT),
                in_specs=[
                    pl.BlockSpec((1, Tt, B, 4 * H), time_map),
                    pl.BlockSpec((1, H, 4 * H), lambda d, tb: (d, 0, 0)),
                ],
                out_specs=pl.BlockSpec((1, Tt, B, H), time_map),
                scratch_shapes=[
                    pltpu.VMEM((B, H), jnp.float32),   # h carry
                    pltpu.VMEM((B, H), jnp.float32),   # c carry
                ],
            ),
            compiler_params=pltpu.CompilerParams(
                dimension_semantics=("parallel", "arbitrary")),
        )(xp, whh)

        parts = [out[0], out[1]]   # fwd / bwd hidden states, each (T, B, H)

    # (2, T, B, H) -> (B, T, 2H): per-timestep concat [fwd, bwd], batch_first.
    return jnp.transpose(out, (2, 1, 0, 3)).reshape(B, T, 2 * H)


def init_bilstm_params(key, in_dim, hid_dim, n_layers):
    """Deterministic init matching PyTorch nn.LSTM shapes, U(-1/sqrt(H), 1/sqrt(H))."""
    k = 1.0 / math.sqrt(hid_dim)
    params = []
    for layer in range(n_layers):
        layer_in = in_dim if layer == 0 else 2 * hid_dim
        layer_p = []
        for _direction in range(2):
            key, k0, k1, k2, k3 = jax.random.split(key, 5)
            w_ih = jax.random.uniform(k0, (4 * hid_dim, layer_in), jnp.float32, -k, k)
            w_hh = jax.random.uniform(k1, (4 * hid_dim, hid_dim), jnp.float32, -k, k)
            b_ih = jax.random.uniform(k2, (4 * hid_dim,), jnp.float32, -k, k)
            b_hh = jax.random.uniform(k3, (4 * hid_dim,), jnp.float32, -k, k)
            layer_p.append((w_ih, w_hh, b_ih, b_hh))
        params.append(layer_p)
    return params


# --- pure-JAX reference (lax.scan) for correctness checking ---
def _lstm_ref_direction(x_tbd, w_ih, w_hh, b_ih, b_hh, hid_dim, reverse):
    T, B, _ = x_tbd.shape
    H = hid_dim
    xs = x_tbd[::-1] if reverse else x_tbd

    def step(carry, x_t):
        h, c = carry
        gates = x_t @ w_ih.T + h @ w_hh.T + b_ih + b_hh
        i, f, g, o = jnp.split(gates, 4, axis=-1)
        i = jax.nn.sigmoid(i)
        f = jax.nn.sigmoid(f)
        g = jnp.tanh(g)
        o = jax.nn.sigmoid(o)
        c = f * c + i * g
        h = o * jnp.tanh(c)
        return (h, c), h

    _, hs = jax.lax.scan(step, (jnp.zeros((B, H), jnp.float32),
                                jnp.zeros((B, H), jnp.float32)), xs)
    return hs[::-1] if reverse else hs


def _bilstm_ref(x, params, hid_dim):
    inp = jnp.transpose(x, (1, 0, 2)).astype(jnp.float32)
    for layer_p in params:
        f = _lstm_ref_direction(inp, *layer_p[0], hid_dim, False)
        b = _lstm_ref_direction(inp, *layer_p[1], hid_dim, True)
        inp = jnp.concatenate([f, b], axis=-1)
    return jnp.transpose(inp, (1, 0, 2))


if __name__ == "__main__":
    # Small shapes consistent with the module: x is (batch, seq, in_dim).
    B, T, in_dim, hid_dim, n_layers = 2, 8, 4, 32, 2
    # dropout treated as 0 (eval-mode / no-op between layers)

    key = jax.random.PRNGKey(0)
    kx, kp = jax.random.split(key)
    x = jax.random.normal(kx, (B, T, in_dim), dtype=jnp.float32)
    params = init_bilstm_params(kp, in_dim, hid_dim, n_layers)

    fwd = jax.jit(functools.partial(bilstm_decoder_forward, hid_dim=hid_dim))
    out = jax.block_until_ready(fwd(x, params))
    assert out.shape == (B, T, 2 * hid_dim), out.shape

    ref = jax.block_until_ready(_bilstm_ref(x, params, hid_dim))
    assert jnp.allclose(out, ref, atol=1e-4, rtol=1e-4), \
        float(jnp.max(jnp.abs(out - ref)))

    print("KERNEL_OK")
</pallas_src>

<mosaic_0001>
module attributes {stable_mosaic.version = 11 : i64} {
  func.func @_bilstm_kernel(%arg0: i32, %arg1: i32, %arg2: memref<1x8x2x128xf32, #tpu.memory_space<vmem>>, %arg3: memref<1x32x128xf32, #tpu.memory_space<vmem>>, %arg4: memref<1x8x2x32xf32, #tpu.memory_space<vmem>>, %arg5: memref<2x32xf32, #tpu.memory_space<vmem>>, %arg6: memref<2x32xf32, #tpu.memory_space<vmem>>) attributes {dimension_semantics = [#tpu.dimension_semantics<parallel>, #tpu.dimension_semantics<arbitrary>], iteration_bounds = array<i64: 2, 1>, scalar_prefetch = 0 : i64, scratch_operands = 2 : i64, tpu.core_type = #tpu.core_type<tc>, window_params = [{transform_indices = @transform_0, window_bounds = array<i64: 1, 8, 2, 128>}, {transform_indices = @transform_1, window_bounds = array<i64: 1, 32, 128>}, {transform_indices = @transform_2, window_bounds = array<i64: 1, 8, 2, 32>}]} {
    %c0_i32 = arith.constant 0 : i32
    %0 = arith.cmpi eq, %arg1, %c0_i32 : i32
    %1 = arith.extui %0 : i1 to i32
    %c0_i32_0 = arith.constant 0 : i32
    %2 = arith.cmpi ne, %1, %c0_i32_0 : i32
    scf.if %2 {
      %cst_107 = arith.constant 0.000000e+00 : f32
      %321 = vector.broadcast %cst_107 : f32 to vector<2x32xf32>
      %c0_108 = arith.constant 0 : index
      %c0_109 = arith.constant 0 : index
      %322 = vector.load %arg5[%c0_108, %c0_109] : memref<2x32xf32, #tpu.memory_space<vmem>>, vector<2x32xf32>
      tpu.vector_store %arg5[%c0_108, %c0_109], %321 {strides = array<i32>} : memref<2x32xf32, #tpu.memory_space<vmem>>, vector<2x32xf32>,
      %cst_110 = arith.constant 0.000000e+00 : f32
      %323 = vector.broadcast %cst_110 : f32 to vector<2x32xf32>
      %c0_111 = arith.constant 0 : index
      %c0_112 = arith.constant 0 : index
      %324 = vector.load %arg6[%c0_111, %c0_112] : memref<2x32xf32, #tpu.memory_space<vmem>>, vector<2x32xf32>
      tpu.vector_store %arg6[%c0_111, %c0_112], %323 {strides = array<i32>} : memref<2x32xf32, #tpu.memory_space<vmem>>, vector<2x32xf32>,
    } else {
    }
    %c0 = arith.constant 0 : index
    %c0_1 = arith.constant 0 : index
    %c0_2 = arith.constant 0 : index
    %3 = vector.load %arg3[%c0, %c0_1, %c0_2] : memref<1x32x128xf32, #tpu.memory_space<vmem>>, vector<1x32x128xf32>
    %4 = vector.shape_cast %3 : vector<1x32x128xf32> to vector<32x128xf32>
    %c0_3 = arith.constant 0 : index
    %c0_4 = arith.constant 0 : index
    %5 = vector.load %arg5[%c0_3, %c0_4] : memref<2x32xf32, #tpu.memory_space<vmem>>, vector<2x32xf32>
    %c0_5 = arith.constant 0 : index
    %c0_6 = arith.constant 0 : index
    %6 = vector.load %arg6[%c0_5, %c0_6] : memref<2x32xf32, #tpu.memory_space<vmem>>, vector<2x32xf32>
    %c0_i32_7 = arith.constant 0 : i32
    %c1_i32 = arith.constant 1 : i32
    %7 = arith.subi %c1_i32, %arg0 : i32
    %8 = arith.muli %7, %c0_i32_7 : i32
    %c7_i32 = arith.constant 7 : i32
    %9 = arith.subi %c7_i32, %c0_i32_7 : i32
    %10 = arith.muli %arg0, %9 : i32
    %11 = arith.addi %8, %10 : i32
    %c0_8 = arith.constant 0 : index
    %12 = arith.index_cast %11 : i32 to index
    %c0_9 = arith.constant 0 : index
    %c0_10 = arith.constant 0 : index
    %13 = vector.load %arg2[%c0_8, %12, %c0_9, %c0_10] : memref<1x8x2x128xf32, #tpu.memory_space<vmem>>, vector<1x1x2x128xf32>
    %14 = vector.shape_cast %13 : vector<1x1x2x128xf32> to vector<2x128xf32>
    %cst = arith.constant dense<0.000000e+00> : vector<2x128xf32>
    %15 = tpu.matmul %5, %4, %cst {dimension_numbers = #tpu.dot_dimension_numbers<[1], [0], [0], [1], [0, 0, 1, 1], [], []>} : vector<2x32xf32>, vector<32x128xf32>, vector<2x128xf32> -> vector<2x128xf32>
    %16 = arith.addf %14, %15 : vector<2x128xf32>
    %17 = vector.extract_strided_slice %16 {offsets = [0, 0], sizes = [2, 32], strides = [1, 1]} : vector<2x128xf32> to vector<2x32xf32>
    %18 = arith.negf %17 : vector<2x32xf32>
    %19 = math.exp %18 : vector<2x32xf32>
    %cst_11 = arith.constant 1.000000e+00 : f32
    %20 = vector.broadcast %cst_11 : f32 to vector<2x32xf32>
    %21 = arith.addf %20, %19 : vector<2x32xf32>
    %22 = arith.divf %20, %21 : vector<2x32xf32>
    %23 = vector.extract_strided_slice %16 {offsets = [0, 32], sizes = [2, 32], strides = [1, 1]} : vector<2x128xf32> to vector<2x32xf32>
    %24 = arith.negf %23 : vector<2x32xf32>
    %25 = math.exp %24 : vector<2x32xf32>
    %cst_12 = arith.constant 1.000000e+00 : f32
    %26 = vector.broadcast %cst_12 : f32 to vector<2x32xf32>
    %27 = arith.addf %26, %25 : vector<2x32xf32>
    %28 = arith.divf %26, %27 : vector<2x32xf32>
    %29 = vector.extract_strided_slice %16 {offsets = [0, 64], sizes = [2, 32], strides = [1, 1]} : vector<2x128xf32> to vector<2x32xf32>
    %30 = math.tanh %29 : vector<2x32xf32>
    %31 = vector.extract_strided_slice %16 {offsets = [0, 96], sizes = [2, 32], strides = [1, 1]} : vector<2x128xf32> to vector<2x32xf32>
    %32 = arith.negf %31 : vector<2x32xf32>
    %33 = math.exp %32 : vector<2x32xf32>
    %cst_13 = arith.constant 1.000000e+00 : f32
    %34 = vector.broadcast %cst_13 : f32 to vector<2x32xf32>
    %35 = arith.addf %34, %33 : vector<2x32xf32>
    %36 = arith.divf %34, %35 : vector<2x32xf32>
    %37 = arith.mulf %28, %6 : vector<2x32xf32>
    %38 = arith.mulf %22, %30 : vector<2x32xf32>
    %39 = arith.addf %37, %38 : vector<2x32xf32>
    %40 = math.tanh %39 : vector<2x32xf32>
    %41 = arith.mulf %36, %40 : vector<2x32xf32>
    %c0_14 = arith.constant 0 : index
    %42 = arith.index_cast %11 : i32 to index
    %c0_15 = arith.constant 0 : index
    %c0_16 = arith.constant 0 : index
    %43 = vector.load %arg4[%c0_14, %42, %c0_15, %c0_16] : memref<1x8x2x32xf32, #tpu.memory_space<vmem>>, vector<1x1x2x32xf32>
    %44 = vector.shape_cast %43 : vector<1x1x2x32xf32> to vector<2x32xf32>
    %45 = vector.shape_cast %41 : vector<2x32xf32> to vector<1x1x2x32xf32>
    tpu.vector_store %arg4[%c0_14, %42, %c0_15, %c0_16], %45 {strides = array<i32>} : memref<1x8x2x32xf32, #tpu.memory_space<vmem>>, vector<1x1x2x32xf32>,
    %c1_i32_17 = arith.constant 1 : i32
    %c1_i32_18 = arith.constant 1 : i32
    %46 = arith.subi %c1_i32_18, %arg0 : i32
    %47 = arith.muli %46, %c1_i32_17 : i32
    %c7_i32_19 = arith.constant 7 : i32
    %48 = arith.subi %c7_i32_19, %c1_i32_17 : i32
    %49 = arith.muli %arg0, %48 : i32
    %50 = arith.addi %47, %49 : i32
    %c0_20 = arith.constant 0 : index
    %51 = arith.index_cast %50 : i32 to index
    %c0_21 = arith.constant 0 : index
    %c0_22 = arith.constant 0 : index
    %52 = vector.load %arg2[%c0_20, %51, %c0_21, %c0_22] : memref<1x8x2x128xf32, #tpu.memory_space<vmem>>, vector<1x1x2x128xf32>
    %53 = vector.shape_cast %52 : vector<1x1x2x128xf32> to vector<2x128xf32>
    %cst_23 = arith.constant dense<0.000000e+00> : vector<2x128xf32>
    %54 = tpu.matmul %41, %4, %cst_23 {dimension_numbers = #tpu.dot_dimension_numbers<[1], [0], [0], [1], [0, 0, 1, 1], [], []>} : vector<2x32xf32>, vector<32x128xf32>, vector<2x128xf32> -> vector<2x128xf32>
    %55 = arith.addf %53, %54 : vector<2x128xf32>
    %56 = vector.extract_strided_slice %55 {offsets = [0, 0], sizes = [2, 32], strides = [1, 1]} : vector<2x128xf32> to vector<2x32xf32>
    %57 = arith.negf %56 : vector<2x32xf32>
    %58 = math.exp %57 : vector<2x32xf32>
    %cst_24 = arith.constant 1.000000e+00 : f32
    %59 = vector.broadcast %cst_24 : f32 to vector<2x32xf32>
    %60 = arith.addf %59, %58 : vector<2x32xf32>
    %61 = arith.divf %59, %60 : vector<2x32xf32>
    %62 = vector.extract_strided_slice %55 {offsets = [0, 32], sizes = [2, 32], strides = [1, 1]} : vector<2x128xf32> to vector<2x32xf32>
    %63 = arith.negf %62 : vector<2x32xf32>
    %64 = math.exp %63 : vector<2x32xf32>
    %cst_25 = arith.constant 1.000000e+00 : f32
    %65 = vector.broadcast %cst_25 : f32 to vector<2x32xf32>
    %66 = arith.addf %65, %64 : vector<2x32xf32>
    %67 = arith.divf %65, %66 : vector<2x32xf32>
    %68 = vector.extract_strided_slice %55 {offsets = [0, 64], sizes = [2, 32], strides = [1, 1]} : vector<2x128xf32> to vector<2x32xf32>
    %69 = math.tanh %68 : vector<2x32xf32>
    %70 = vector.extract_strided_slice %55 {offsets = [0, 96], sizes = [2, 32], strides = [1, 1]} : vector<2x128xf32> to vector<2x32xf32>
    %71 = arith.negf %70 : vector<2x32xf32>
    %72 = math.exp %71 : vector<2x32xf32>
    %cst_26 = arith.constant 1.000000e+00 : f32
    %73 = vector.broadcast %cst_26 : f32 to vector<2x32xf32>
    %74 = arith.addf %73, %72 : vector<2x32xf32>
    %75 = arith.divf %73, %74 : vector<2x32xf32>
    %76 = arith.mulf %67, %39 : vector<2x32xf32>
    %77 = arith.mulf %61, %69 : vector<2x32xf32>
    %78 = arith.addf %76, %77 : vector<2x32xf32>
    %79 = math.tanh %78 : vector<2x32xf32>
    %80 = arith.mulf %75, %79 : vector<2x32xf32>
    %c0_27 = arith.constant 0 : index
    %81 = arith.index_cast %50 : i32 to index
    %c0_28 = arith.constant 0 : index
    %c0_29 = arith.constant 0 : index
    %82 = vector.load %arg4[%c0_27, %81, %c0_28, %c0_29] : memref<1x8x2x32xf32, #tpu.memory_space<vmem>>, vector<1x1x2x32xf32>
    %83 = vector.shape_cast %82 : vector<1x1x2x32xf32> to vector<2x32xf32>
    %84 = vector.shape_cast %80 : vector<2x32xf32> to vector<1x1x2x32xf32>
    tpu.vector_store %arg4[%c0_27, %81, %c0_28, %c0_29], %84 {strides = array<i32>} : memref<1x8x2x32xf32, #tpu.memory_space<vmem>>, vector<1x1x2x32xf32>,
    %c2_i32 = arith.constant 2 : i32
    %c1_i32_30 = arith.constant 1 : i32
    %85 = arith.subi %c1_i32_30, %arg0 : i32
    %86 = arith.muli %85, %c2_i32 : i32
    %c7_i32_31 = arith.constant 7 : i32
    %87 = arith.subi %c7_i32_31, %c2_i32 : i32
    %88 = arith.muli %arg0, %87 : i32
    %89 = arith.addi %86, %88 : i32
    %c0_32 = arith.constant 0 : index
    %90 = arith.index_cast %89 : i32 to index
    %c0_33 = arith.constant 0 : index
    %c0_34 = arith.constant 0 : index
    %91 = vector.load %arg2[%c0_32, %90, %c0_33, %c0_34] : memref<1x8x2x128xf32, #tpu.memory_space<vmem>>, vector<1x1x2x128xf32>
    %92 = vector.shape_cast %91 : vector<1x1x2x128xf32> to vector<2x128xf32>
    %cst_35 = arith.constant dense<0.000000e+00> : vector<2x128xf32>
    %93 = tpu.matmul %80, %4, %cst_35 {dimension_numbers = #tpu.dot_dimension_numbers<[1], [0], [0], [1], [0, 0, 1, 1], [], []>} : vector<2x32xf32>, vector<32x128xf32>, vector<2x128xf32> -> vector<2x128xf32>
    %94 = arith.addf %92, %93 : vector<2x128xf32>
    %95 = vector.extract_strided_slice %94 {offsets = [0, 0], sizes = [2, 32], strides = [1, 1]} : vector<2x128xf32> to vector<2x32xf32>
    %96 = arith.negf %95 : vector<2x32xf32>
    %97 = math.exp %96 : vector<2x32xf32>
    %cst_36 = arith.constant 1.000000e+00 : f32
    %98 = vector.broadcast %cst_36 : f32 to vector<2x32xf32>
    %99 = arith.addf %98, %97 : vector<2x32xf32>
    %100 = arith.divf %98, %99 : vector<2x32xf32>
    %101 = vector.extract_strided_slice %94 {offsets = [0, 32], sizes = [2, 32], strides = [1, 1]} : vector<2x128xf32> to vector<2x32xf32>
    %102 = arith.negf %101 : vector<2x32xf32>
    %103 = math.exp %102 : vector<2x32xf32>
    %cst_37 = arith.constant 1.000000e+00 : f32
    %104 = vector.broadcast %cst_37 : f32 to vector<2x32xf32>
    %105 = arith.addf %104, %103 : vector<2x32xf32>
    %106 = arith.divf %104, %105 : vector<2x32xf32>
    %107 = vector.extract_strided_slice %94 {offsets = [0, 64], sizes = [2, 32], strides = [1, 1]} : vector<2x128xf32> to vector<2x32xf32>
    %108 = math.tanh %107 : vector<2x32xf32>
    %109 = vector.extract_strided_slice %94 {offsets = [0, 96], sizes = [2, 32], strides = [1, 1]} : vector<2x128xf32> to vector<2x32xf32>
    %110 = arith.negf %109 : vector<2x32xf32>
    %111 = math.exp %110 : vector<2x32xf32>
    %cst_38 = arith.constant 1.000000e+00 : f32
    %112 = vector.broadcast %cst_38 : f32 to vector<2x32xf32>
    %113 = arith.addf %112, %111 : vector<2x32xf32>
    %114 = arith.divf %112, %113 : vector<2x32xf32>
    %115 = arith.mulf %106, %78 : vector<2x32xf32>
    %116 = arith.mulf %100, %108 : vector<2x32xf32>
    %117 = arith.addf %115, %116 : vector<2x32xf32>
    %118 = math.tanh %117 : vector<2x32xf32>
    %119 = arith.mulf %114, %118 : vector<2x32xf32>
    %c0_39 = arith.constant 0 : index
    %120 = arith.index_cast %89 : i32 to index
    %c0_40 = arith.constant 0 : index
    %c0_41 = arith.constant 0 : index
    %121 = vector.load %arg4[%c0_39, %120, %c0_40, %c0_41] : memref<1x8x2x32xf32, #tpu.memory_space<vmem>>, vector<1x1x2x32xf32>
    %122 = vector.shape_cast %121 : vector<1x1x2x32xf32> to vector<2x32xf32>
    %123 = vector.shape_cast %119 : vector<2x32xf32> to vector<1x1x2x32xf32>
    tpu.vector_store %arg4[%c0_39, %120, %c0_40, %c0_41], %123 {strides = array<i32>} : memref<1x8x2x32xf32, #tpu.memory_space<vmem>>, vector<1x1x2x32xf32>,
    %c3_i32 = arith.constant 3 : i32
    %c1_i32_42 = arith.constant 1 : i32
    %124 = arith.subi %c1_i32_42, %arg0 : i32
    %125 = arith.muli %124, %c3_i32 : i32
    %c7_i32_43 = arith.constant 7 : i32
    %126 = arith.subi %c7_i32_43, %c3_i32 : i32
    %127 = arith.muli %arg0, %126 : i32
    %128 = arith.addi %125, %127 : i32
    %c0_44 = arith.constant 0 : index
    %129 = arith.index_cast %128 : i32 to index
    %c0_45 = arith.constant 0 : index
    %c0_46 = arith.constant 0 : index
    %130 = vector.load %arg2[%c0_44, %129, %c0_45, %c0_46] : memref<1x8x2x128xf32, #tpu.memory_space<vmem>>, vector<1x1x2x128xf32>
    %131 = vector.shape_cast %130 : vector<1x1x2x128xf32> to vector<2x128xf32>
    %cst_47 = arith.constant dense<0.000000e+00> : vector<2x128xf32>
    %132 = tpu.matmul %119, %4, %cst_47 {dimension_numbers = #tpu.dot_dimension_numbers<[1], [0], [0], [1], [0, 0, 1, 1], [], []>} : vector<2x32xf32>, vector<32x128xf32>, vector<2x128xf32> -> vector<2x128xf32>
    %133 = arith.addf %131, %132 : vector<2x128xf32>
    %134 = vector.extract_strided_slice %133 {offsets = [0, 0], sizes = [2, 32], strides = [1, 1]} : vector<2x128xf32> to vector<2x32xf32>
    %135 = arith.negf %134 : vector<2x32xf32>
    %136 = math.exp %135 : vector<2x32xf32>
    %cst_48 = arith.constant 1.000000e+00 : f32
    %137 = vector.broadcast %cst_48 : f32 to vector<2x32xf32>
    %138 = arith.addf %137, %136 : vector<2x32xf32>
    %139 = arith.divf %137, %138 : vector<2x32xf32>
    %140 = vector.extract_strided_slice %133 {offsets = [0, 32], sizes = [2, 32], strides = [1, 1]} : vector<2x128xf32> to vector<2x32xf32>
    %141 = arith.negf %140 : vector<2x32xf32>
    %142 = math.exp %141 : vector<2x32xf32>
    %cst_49 = arith.constant 1.000000e+00 : f32
    %143 = vector.broadcast %cst_49 : f32 to vector<2x32xf32>
    %144 = arith.addf %143, %142 : vector<2x32xf32>
    %145 = arith.divf %143, %144 : vector<2x32xf32>
    %146 = vector.extract_strided_slice %133 {offsets = [0, 64], sizes = [2, 32], strides = [1, 1]} : vector<2x128xf32> to vector<2x32xf32>
    %147 = math.tanh %146 : vector<2x32xf32>
    %148 = vector.extract_strided_slice %133 {offsets = [0, 96], sizes = [2, 32], strides = [1, 1]} : vector<2x128xf32> to vector<2x32xf32>
    %149 = arith.negf %148 : vector<2x32xf32>
    %150 = math.exp %149 : vector<2x32xf32>
    %cst_50 = arith.constant 1.000000e+00 : f32
    %151 = vector.broadcast %cst_50 : f32 to vector<2x32xf32>
    %152 = arith.addf %151, %150 : vector<2x32xf32>
    %153 = arith.divf %151, %152 : vector<2x32xf32>
    %154 = arith.mulf %145, %117 : vector<2x32xf32>
    %155 = arith.mulf %139, %147 : vector<2x32xf32>
    %156 = arith.addf %154, %155 : vector<2x32xf32>
    %157 = math.tanh %156 : vector<2x32xf32>
    %158 = arith.mulf %153, %157 : vector<2x32xf32>
    %c0_51 = arith.constant 0 : index
    %159 = arith.index_cast %128 : i32 to index
    %c0_52 = arith.constant 0 : index
    %c0_53 = arith.constant 0 : index
    %160 = vector.load %arg4[%c0_51, %159, %c0_52, %c0_53] : memref<1x8x2x32xf32, #tpu.memory_space<vmem>>, vector<1x1x2x32xf32>
    %161 = vector.shape_cast %160 : vector<1x1x2x32xf32> to vector<2x32xf32>
    %162 = vector.shape_cast %158 : vector<2x32xf32> to vector<1x1x2x32xf32>
    tpu.vector_store %arg4[%c0_51, %159, %c0_52, %c0_53], %162 {strides = array<i32>} : memref<1x8x2x32xf32, #tpu.memory_space<vmem>>, vector<1x1x2x32xf32>,
    %c4_i32 = arith.constant 4 : i32
    %c1_i32_54 = arith.constant 1 : i32
    %163 = arith.subi %c1_i32_54, %arg0 : i32
    %164 = arith.muli %163, %c4_i32 : i32
    %c7_i32_55 = arith.constant 7 : i32
    %165 = arith.subi %c7_i32_55, %c4_i32 : i32
    %166 = arith.muli %arg0, %165 : i32
    %167 = arith.addi %164, %166 : i32
    %c0_56 = arith.constant 0 : index
    %168 = arith.index_cast %167 : i32 to index
    %c0_57 = arith.constant 0 : index
    %c0_58 = arith.constant 0 : index
    %169 = vector.load %arg2[%c0_56, %168, %c0_57, %c0_58] : memref<1x8x2x128xf32, #tpu.memory_space<vmem>>, vector<1x1x2x128xf32>
    %170 = vector.shape_cast %169 : vector<1x1x2x128xf32> to vector<2x128xf32>
    %cst_59 = arith.constant dense<0.000000e+00> : vector<2x128xf32>
    %171 = tpu.matmul %158, %4, %cst_59 {dimension_numbers = #tpu.dot_dimension_numbers<[1], [0], [0], [1], [0, 0, 1, 1], [], []>} : vector<2x32xf32>, vector<32x128xf32>, vector<2x128xf32> -> vector<2x128xf32>
    %172 = arith.addf %170, %171 : vector<2x128xf32>
    %173 = vector.extract_strided_slice %172 {offsets = [0, 0], sizes = [2, 32], strides = [1, 1]} : vector<2x128xf32> to vector<2x32xf32>
    %174 = arith.negf %173 : vector<2x32xf32>
    %175 = math.exp %174 : vector<2x32xf32>
    %cst_60 = arith.constant 1.000000e+00 : f32
    %176 = vector.broadcast %cst_60 : f32 to vector<2x32xf32>
    %177 = arith.addf %176, %175 : vector<2x32xf32>
    %178 = arith.divf %176, %177 : vector<2x32xf32>
    %179 = vector.extract_strided_slice %172 {offsets = [0, 32], sizes = [2, 32], strides = [1, 1]} : vector<2x128xf32> to vector<2x32xf32>
    %180 = arith.negf %179 : vector<2x32xf32>
    %181 = math.exp %180 : vector<2x32xf32>
    %cst_61 = arith.constant 1.000000e+00 : f32
    %182 = vector.broadcast %cst_61 : f32 to vector<2x32xf32>
    %183 = arith.addf %182, %181 : vector<2x32xf32>
    %184 = arith.divf %182, %183 : vector<2x32xf32>
    %185 = vector.extract_strided_slice %172 {offsets = [0, 64], sizes = [2, 32], strides = [1, 1]} : vector<2x128xf32> to vector<2x32xf32>
    %186 = math.tanh %185 : vector<2x32xf32>
    %187 = vector.extract_strided_slice %172 {offsets = [0, 96], sizes = [2, 32], strides = [1, 1]} : vector<2x128xf32> to vector<2x32xf32>
    %188 = arith.negf %187 : vector<2x32xf32>
    %189 = math.exp %188 : vector<2x32xf32>
    %cst_62 = arith.constant 1.000000e+00 : f32
    %190 = vector.broadcast %cst_62 : f32 to vector<2x32xf32>
    %191 = arith.addf %190, %189 : vector<2x32xf32>
    %192 = arith.divf %190, %191 : vector<2x32xf32>
    %193 = arith.mulf %184, %156 : vector<2x32xf32>
    %194 = arith.mulf %178, %186 : vector<2x32xf32>
    %195 = arith.addf %193, %194 : vector<2x32xf32>
    %196 = math.tanh %195 : vector<2x32xf32>
    %197 = arith.mulf %192, %196 : vector<2x32xf32>
    %c0_63 = arith.constant 0 : index
    %198 = arith.index_cast %167 : i32 to index
    %c0_64 = arith.constant 0 : index
    %c0_65 = arith.constant 0 : index
    %199 = vector.load %arg4[%c0_63, %198, %c0_64, %c0_65] : memref<1x8x2x32xf32, #tpu.memory_space<vmem>>, vector<1x1x2x32xf32>
    %200 = vector.shape_cast %199 : vector<1x1x2x32xf32> to vector<2x32xf32>
    %201 = vector.shape_cast %197 : vector<2x32xf32> to vector<1x1x2x32xf32>
    tpu.vector_store %arg4[%c0_63, %198, %c0_64, %c0_65], %201 {strides = array<i32>} : memref<1x8x2x32xf32, #tpu.memory_space<vmem>>, vector<1x1x2x32xf32>,
    %c5_i32 = arith.constant 5 : i32
    %c1_i32_66 = arith.constant 1 : i32
    %202 = arith.subi %c1_i32_66, %arg0 : i32
    %203 = arith.muli %202, %c5_i32 : i32
    %c7_i32_67 = arith.constant 7 : i32
    %204 = arith.subi %c7_i32_67, %c5_i32 : i32
    %205 = arith.muli %arg0, %204 : i32
    %206 = arith.addi %203, %205 : i32
    %c0_68 = arith.constant 0 : index
    %207 = arith.index_cast %206 : i32 to index
    %c0_69 = arith.constant 0 : index
    %c0_70 = arith.constant 0 : index
    %208 = vector.load %arg2[%c0_68, %207, %c0_69, %c0_70] : memref<1x8x2x128xf32, #tpu.memory_space<vmem>>, vector<1x1x2x128xf32>
    %209 = vector.shape_cast %208 : vector<1x1x2x128xf32> to vector<2x128xf32>
    %cst_71 = arith.constant dense<0.000000e+00> : vector<2x128xf32>
    %210 = tpu.matmul %197, %4, %cst_71 {dimension_numbers = #tpu.dot_dimension_numbers<[1], [0], [0], [1], [0, 0, 1, 1], [], []>} : vector<2x32xf32>, vector<32x128xf32>, vector<2x128xf32> -> vector<2x128xf32>
    %211 = arith.addf %209, %210 : vector<2x128xf32>
    %212 = vector.extract_strided_slice %211 {offsets = [0, 0], sizes = [2, 32], strides = [1, 1]} : vector<2x128xf32> to vector<2x32xf32>
    %213 = arith.negf %212 : vector<2x32xf32>
    %214 = math.exp %213 : vector<2x32xf32>
    %cst_72 = arith.constant 1.000000e+00 : f32
    %215 = vector.broadcast %cst_72 : f32 to vector<2x32xf32>
    %216 = arith.addf %215, %214 : vector<2x32xf32>
    %217 = arith.divf %215, %216 : vector<2x32xf32>
    %218 = vector.extract_strided_slice %211 {offsets = [0, 32], sizes = [2, 32], strides = [1, 1]} : vector<2x128xf32> to vector<2x32xf32>
    %219 = arith.negf %218 : vector<2x32xf32>
    %220 = math.exp %219 : vector<2x32xf32>
    %cst_73 = arith.constant 1.000000e+00 : f32
    %221 = vector.broadcast %cst_73 : f32 to vector<2x32xf32>
    %222 = arith.addf %221, %220 : vector<2x32xf32>
    %223 = arith.divf %221, %222 : vector<2x32xf32>
    %224 = vector.extract_strided_slice %211 {offsets = [0, 64], sizes = [2, 32], strides = [1, 1]} : vector<2x128xf32> to vector<2x32xf32>
    %225 = math.tanh %224 : vector<2x32xf32>
    %226 = vector.extract_strided_slice %211 {offsets = [0, 96], sizes = [2, 32], strides = [1, 1]} : vector<2x128xf32> to vector<2x32xf32>
    %227 = arith.negf %226 : vector<2x32xf32>
    %228 = math.exp %227 : vector<2x32xf32>
    %cst_74 = arith.constant 1.000000e+00 : f32
    %229 = vector.broadcast %cst_74 : f32 to vector<2x32xf32>
    %230 = arith.addf %229, %228 : vector<2x32xf32>
    %231 = arith.divf %229, %230 : vector<2x32xf32>
    %232 = arith.mulf %223, %195 : vector<2x32xf32>
    %233 = arith.mulf %217, %225 : vector<2x32xf32>
    %234 = arith.addf %232, %233 : vector<2x32xf32>
    %235 = math.tanh %234 : vector<2x32xf32>
    %236 = arith.mulf %231, %235 : vector<2x32xf32>
    %c0_75 = arith.constant 0 : index
    %237 = arith.index_cast %206 : i32 to index
    %c0_76 = arith.constant 0 : index
    %c0_77 = arith.constant 0 : index
    %238 = vector.load %arg4[%c0_75, %237, %c0_76, %c0_77] : memref<1x8x2x32xf32, #tpu.memory_space<vmem>>, vector<1x1x2x32xf32>
    %239 = vector.shape_cast %238 : vector<1x1x2x32xf32> to vector<2x32xf32>
    %240 = vector.shape_cast %236 : vector<2x32xf32> to vector<1x1x2x32xf32>
    tpu.vector_store %arg4[%c0_75, %237, %c0_76, %c0_77], %240 {strides = array<i32>} : memref<1x8x2x32xf32, #tpu.memory_space<vmem>>, vector<1x1x2x32xf32>,
    %c6_i32 = arith.constant 6 : i32
    %c1_i32_78 = arith.constant 1 : i32
    %241 = arith.subi %c1_i32_78, %arg0 : i32
    %242 = arith.muli %241, %c6_i32 : i32
    %c7_i32_79 = arith.constant 7 : i32
    %243 = arith.subi %c7_i32_79, %c6_i32 : i32
    %244 = arith.muli %arg0, %243 : i32
    %245 = arith.addi %242, %244 : i32
    %c0_80 = arith.constant 0 : index
    %246 = arith.index_cast %245 : i32 to index
    %c0_81 = arith.constant 0 : index
    %c0_82 = arith.constant 0 : index
    %247 = vector.load %arg2[%c0_80, %246, %c0_81, %c0_82] : memref<1x8x2x128xf32, #tpu.memory_space<vmem>>, vector<1x1x2x128xf32>
    %248 = vector.shape_cast %247 : vector<1x1x2x128xf32> to vector<2x128xf32>
    %cst_83 = arith.constant dense<0.000000e+00> : vector<2x128xf32>
    %249 = tpu.matmul %236, %4, %cst_83 {dimension_numbers = #tpu.dot_dimension_numbers<[1], [0], [0], [1], [0, 0, 1, 1], [], []>} : vector<2x32xf32>, vector<32x128xf32>, vector<2x128xf32> -> vector<2x128xf32>
    %250 = arith.addf %248, %249 : vector<2x128xf32>
    %251 = vector.extract_strided_slice %250 {offsets = [0, 0], sizes = [2, 32], strides = [1, 1]} : vector<2x128xf32> to vector<2x32xf32>
    %252 = arith.negf %251 : vector<2x32xf32>
    %253 = math.exp %252 : vector<2x32xf32>
    %cst_84 = arith.constant 1.000000e+00 : f32
    %254 = vector.broadcast %cst_84 : f32 to vector<2x32xf32>
    %255 = arith.addf %254, %253 : vector<2x32xf32>
    %256 = arith.divf %254, %255 : vector<2x32xf32>
    %257 = vector.extract_strided_slice %250 {offsets = [0, 32], sizes = [2, 32], strides = [1, 1]} : vector<2x128xf32> to vector<2x32xf32>
    %258 = arith.negf %257 : vector<2x32xf32>
    %259 = math.exp %258 : vector<2x32xf32>
    %cst_85 = arith.constant 1.000000e+00 : f32
    %260 = vector.broadcast %cst_85 : f32 to vector<2x32xf32>
    %261 = arith.addf %260, %259 : vector<2x32xf32>
    %262 = arith.divf %260, %261 : vector<2x32xf32>
    %263 = vector.extract_strided_slice %250 {offsets = [0, 64], sizes = [2, 32], strides = [1, 1]} : vector<2x128xf32> to vector<2x32xf32>
    %264 = math.tanh %263 : vector<2x32xf32>
    %265 = vector.extract_strided_slice %250 {offsets = [0, 96], sizes = [2, 32], strides = [1, 1]} : vector<2x128xf32> to vector<2x32xf32>
    %266 = arith.negf %265 : vector<2x32xf32>
    %267 = math.exp %266 : vector<2x32xf32>
    %cst_86 = arith.constant 1.000000e+00 : f32
    %268 = vector.broadcast %cst_86 : f32 to vector<2x32xf32>
    %269 = arith.addf %268, %267 : vector<2x32xf32>
    %270 = arith.divf %268, %269 : vector<2x32xf32>
    %271 = arith.mulf %262, %234 : vector<2x32xf32>
    %272 = arith.mulf %256, %264 : vector<2x32xf32>
    %273 = arith.addf %271, %272 : vector<2x32xf32>
    %274 = math.tanh %273 : vector<2x32xf32>
    %275 = arith.mulf %270, %274 : vector<2x32xf32>
    %c0_87 = arith.constant 0 : index
    %276 = arith.index_cast %245 : i32 to index
    %c0_88 = arith.constant 0 : index
    %c0_89 = arith.constant 0 : index
    %277 = vector.load %arg4[%c0_87, %276, %c0_88, %c0_89] : memref<1x8x2x32xf32, #tpu.memory_space<vmem>>, vector<1x1x2x32xf32>
    %278 = vector.shape_cast %277 : vector<1x1x2x32xf32> to vector<2x32xf32>
    %279 = vector.shape_cast %275 : vector<2x32xf32> to vector<1x1x2x32xf32>
    tpu.vector_store %arg4[%c0_87, %276, %c0_88, %c0_89], %279 {strides = array<i32>} : memref<1x8x2x32xf32, #tpu.memory_space<vmem>>, vector<1x1x2x32xf32>,
    %c7_i32_90 = arith.constant 7 : i32
    %c1_i32_91 = arith.constant 1 : i32
    %280 = arith.subi %c1_i32_91, %arg0 : i32
    %281 = arith.muli %280, %c7_i32_90 : i32
    %c7_i32_92 = arith.constant 7 : i32
    %282 = arith.subi %c7_i32_92, %c7_i32_90 : i32
    %283 = arith.muli %arg0, %282 : i32
    %284 = arith.addi %281, %283 : i32
    %c0_93 = arith.constant 0 : index
    %285 = arith.index_cast %284 : i32 to index
    %c0_94 = arith.constant 0 : index
    %c0_95 = arith.constant 0 : index
    %286 = vector.load %arg2[%c0_93, %285, %c0_94, %c0_95] : memref<1x8x2x128xf32, #tpu.memory_space<vmem>>, vector<1x1x2x128xf32>
    %287 = vector.shape_cast %286 : vector<1x1x2x128xf32> to vector<2x128xf32>
    %cst_96 = arith.constant dense<0.000000e+00> : vector<2x128xf32>
    %288 = tpu.matmul %275, %4, %cst_96 {dimension_numbers = #tpu.dot_dimension_numbers<[1], [0], [0], [1], [0, 0, 1, 1], [], []>} : vector<2x32xf32>, vector<32x128xf32>, vector<2x128xf32> -> vector<2x128xf32>
    %289 = arith.addf %287, %288 : vector<2x128xf32>
    %290 = vector.extract_strided_slice %289 {offsets = [0, 0], sizes = [2, 32], strides = [1, 1]} : vector<2x128xf32> to vector<2x32xf32>
    %291 = arith.negf %290 : vector<2x32xf32>
    %292 = math.exp %291 : vector<2x32xf32>
    %cst_97 = arith.constant 1.000000e+00 : f32
    %293 = vector.broadcast %cst_97 : f32 to vector<2x32xf32>
    %294 = arith.addf %293, %292 : vector<2x32xf32>
    %295 = arith.divf %293, %294 : vector<2x32xf32>
    %296 = vector.extract_strided_slice %289 {offsets = [0, 32], sizes = [2, 32], strides = [1, 1]} : vector<2x128xf32> to vector<2x32xf32>
    %297 = arith.negf %296 : vector<2x32xf32>
    %298 = math.exp %297 : vector<2x32xf32>
    %cst_98 = arith.constant 1.000000e+00 : f32
    %299 = vector.broadcast %cst_98 : f32 to vector<2x32xf32>
    %300 = arith.addf %299, %298 : vector<2x32xf32>
    %301 = arith.divf %299, %300 : vector<2x32xf32>
    %302 = vector.extract_strided_slice %289 {offsets = [0, 64], sizes = [2, 32], strides = [1, 1]} : vector<2x128xf32> to vector<2x32xf32>
    %303 = math.tanh %302 : vector<2x32xf32>
    %304 = vector.extract_strided_slice %289 {offsets = [0, 96], sizes = [2, 32], strides = [1, 1]} : vector<2x128xf32> to vector<2x32xf32>
    %305 = arith.negf %304 : vector<2x32xf32>
    %306 = math.exp %305 : vector<2x32xf32>
    %cst_99 = arith.constant 1.000000e+00 : f32
    %307 = vector.broadcast %cst_99 : f32 to vector<2x32xf32>
    %308 = arith.addf %307, %306 : vector<2x32xf32>
    %309 = arith.divf %307, %308 : vector<2x32xf32>
    %310 = arith.mulf %301, %273 : vector<2x32xf32>
    %311 = arith.mulf %295, %303 : vector<2x32xf32>
    %312 = arith.addf %310, %311 : vector<2x32xf32>
    %313 = math.tanh %312 : vector<2x32xf32>
    %314 = arith.mulf %309, %313 : vector<2x32xf32>
    %c0_100 = arith.constant 0 : index
    %315 = arith.index_cast %284 : i32 to index
    %c0_101 = arith.constant 0 : index
    %c0_102 = arith.constant 0 : index
    %316 = vector.load %arg4[%c0_100, %315, %c0_101, %c0_102] : memref<1x8x2x32xf32, #tpu.memory_space<vmem>>, vector<1x1x2x32xf32>
    %317 = vector.shape_cast %316 : vector<1x1x2x32xf32> to vector<2x32xf32>
    %318 = vector.shape_cast %314 : vector<2x32xf32> to vector<1x1x2x32xf32>
    tpu.vector_store %arg4[%c0_100, %315, %c0_101, %c0_102], %318 {strides = array<i32>} : memref<1x8x2x32xf32, #tpu.memory_space<vmem>>, vector<1x1x2x32xf32>,
    %c8_i32 = arith.constant 8 : i32
    %c0_103 = arith.constant 0 : index
    %c0_104 = arith.constant 0 : index
    %319 = vector.load %arg5[%c0_103, %c0_104] : memref<2x32xf32, #tpu.memory_space<vmem>>, vector<2x32xf32>
    tpu.vector_store %arg5[%c0_103, %c0_104], %314 {strides = array<i32>} : memref<2x32xf32, #tpu.memory_space<vmem>>, vector<2x32xf32>,
    %c0_105 = arith.constant 0 : index
    %c0_106 = arith.constant 0 : index
    %320 = vector.load %arg6[%c0_105, %c0_106] : memref<2x32xf32, #tpu.memory_space<vmem>>, vector<2x32xf32>
    tpu.vector_store %arg6[%c0_105, %c0_106], %312 {strides = array<i32>} : memref<2x32xf32, #tpu.memory_space<vmem>>, vector<2x32xf32>,
    return
  }
  func.func @transform_0(%arg0: i32, %arg1: i32) -> (i32, i32, i32, i32) {
    %c1_i32 = arith.constant 1 : i32
    %0 = arith.subi %c1_i32, %arg0 : i32
    %1 = arith.muli %0, %arg1 : i32
    %c0_i32 = arith.constant 0 : i32
    %2 = arith.subi %c0_i32, %arg1 : i32
    %3 = arith.muli %arg0, %2 : i32
    %4 = arith.addi %1, %3 : i32
    %c0_i32_0 = arith.constant 0 : i32
    %c0_i32_1 = arith.constant 0 : i32
    %c0_i32_2 = arith.constant 0 : i32
    return %arg0, %4, %c0_i32_0, %c0_i32_1 : i32, i32, i32, i32
  }
  func.func @transform_1(%arg0: i32, %arg1: i32) -> (i32, i32, i32) {
    %c0_i32 = arith.constant 0 : i32
    %c0_i32_0 = arith.constant 0 : i32
    %c0_i32_1 = arith.constant 0 : i32
    return %arg0, %c0_i32, %c0_i32_0 : i32, i32, i32
  }
  func.func @transform_2(%arg0: i32, %arg1: i32) -> (i32, i32, i32, i32) {
    %c1_i32 = arith.constant 1 : i32
    %0 = arith.subi %c1_i32, %arg0 : i32
    %1 = arith.muli %0, %arg1 : i32
    %c0_i32 = arith.constant 0 : i32
    %2 = arith.subi %c0_i32, %arg1 : i32
    %3 = arith.muli %arg0, %2 : i32
    %4 = arith.addi %1, %3 : i32
    %c0_i32_0 = arith.constant 0 : i32
    %c0_i32_1 = arith.constant 0 : i32
    %c0_i32_2 = arith.constant 0 : i32
    return %arg0, %4, %c0_i32_0, %c0_i32_1 : i32, i32, i32, i32
  }
}

</mosaic_0001>

<llo_original>
// kernel: bilstm_decoder_forward.2
$region0: #{bilstm_decoder_forward.2}
  #allocation0 [shape = 'u32[]', space=smem, size = 0x4, offset = 0x4, fixed_abs, tag = 'smem constant byte address 0x4 - core index']
  #allocation1 [shape = 'u32[144,128]{1,0:T(1,128)}', space=vmem, size = 0x12000, scoped, tag = 'internal scratch']
  #allocation2 [shape = 'f32[2,32]{1,0:T(2,128)}', space=vmem, size = 0x400, scoped, tag = 'scratch operand']
  #allocation3 [shape = 'f32[2,32]{1,0:T(2,128)}', space=vmem, size = 0x400, scoped, tag = 'scratch operand']
  %s0 = inlined_call_operand.vmem [shape: f32[2,8,2,128], index: 0, kind: input, shape index: {}]
  %s1 = inlined_call_operand.vmem [shape: f32[2,32,128], index: 1, kind: input, shape index: {}]
  %s2 = inlined_call_operand.vmem [shape: f32[2,8,2,32], index: 2, kind: output, shape index: {}]
  %s3 = sld [smem:[#allocation0]]
  $region45: #{bilstm_decoder_forward.2} parent=0
    _
  %s5 = ssub.s32 1, %s3
  %s6 = scalar_select 0, %s5, %s3
  loop: start=0, step=1, limit=4
  $region2: #{bilstm_decoder_forward.2} parent=0 // loop_pre_header
    _
  $region3: #{bilstm_decoder_forward.2} parent=0 // loop_header
    %s8 = sphi 0, %s12
    %p9 = scmp.ge.s32.totalorder %s8, 4
    %s15 = sphi 0, %s27
    %s16 = sphi 0, %s23
    %s17 = sphi 0, %s15
    %s18 = sphi 0, %s16
    %s19 = sphi 0, %s17
    %s20 = sphi 0, %s18
    %s42 = sphi 0, %s44
    %s45 = sphi 0, %s42
    %s46 = sphi 0, %s45
    %s62 = sphi 0, %s46
    %s68 = sphi 0, %s70
    %s71 = sphi 0, %s68
    %s72 = sphi 0, %s71
    %s88 = sphi 0, %s72
    %s106 = sphi 0, %s108
    %s109 = sphi 0, %s106
    %s110 = sphi 0, %s109
    %s126 = sphi 0, %s110
  $region4: #{bilstm_decoder_forward.2} parent=0 // loop_header_branch
    %11 = sbr.rel (%p9) target = $region8
  $region5: #{bilstm_decoder_forward.2} parent=0 // loop_body
    %s13 = ssub.s32 %s8, 1
    %s14 = ssub.s32 %s8, 2
    %s21 = sadd.s32 1, %s16
    %p22 = scmp.ge.s32.totalorder %s21, 1
    %s23 = scalar_select %p22, 0, %s21
    %s24 = sadd.s32 1, %s15
    %s25 = scalar_select %p22, %s24, %s15
    %p26 = scmp.ge.s32.totalorder %s25, 2
    %s27 = scalar_select %p26, 0, %s25
    %s28 = ssub.s32 1, %s15
    %s29 = smul.u32 %s28, %s16
    %s30 = ssub.s32 0, %s16
    %s31 = smul.u32 %s15, %s30
    %s32 = sadd.s32 %s29, %s31
    %s33 = ssub.s32 1, %s27
    %s34 = smul.u32 %s33, %s23
    %s35 = ssub.s32 0, %s23
    %s36 = smul.u32 %s27, %s35
    %s37 = sadd.s32 %s34, %s36
    %s38 = ssub.s32 %s15, %s27
    %s39 = ssub.s32 %s32, %s37
    %s40 = sor.u32 %s38, %s39
    %p41 = scmp.eq.s32.totalorder %s40, 0
    %s43 = sadd.s32 %s42, 1
    %s44 = scalar_select %p41, %s42, %s43
    %p47 = pneg %p41
    %p48 = scmp.eq.s32.totalorder %s8, 1
    %p49 = por %p47, %p48
    %p50 = scmp.ne.s32.totalorder %s42, %s45
    %p51 = scmp.eq.s32.totalorder %s8, 0
    %p52 = por %p50, %p51
    %p53 = scmp.ne.s32.totalorder %s42, %s45
    %p54 = scmp.eq.s32.totalorder %s13, 1
    %p55 = por %p53, %p54
    %p56 = scmp.ne.s32.totalorder %s45, %s46
    %p57 = scmp.eq.s32.totalorder %s13, 0
    %p58 = por %p56, %p57
    %p59 = scmp.ne.s32.totalorder %s45, %s46
    %p60 = scmp.eq.s32.totalorder %s14, 1
    %p61 = por %p59, %p60
    %p63 = scmp.ne.s32.totalorder %s46, %s62
    %p64 = scmp.eq.s32.totalorder %s14, 0
    %p65 = por %p63, %p64
    %s66 = ssub.s32 %s15, %s27
    %p67 = scmp.eq.s32.totalorder %s66, 0
    %s69 = sadd.s32 %s68, 1
    %s70 = scalar_select %p67, %s68, %s69
    %p73 = pneg %p67
    %p74 = scmp.eq.s32.totalorder %s8, 1
    %p75 = por %p73, %p74
    %p76 = scmp.ne.s32.totalorder %s68, %s71
    %p77 = scmp.eq.s32.totalorder %s8, 0
    %p78 = por %p76, %p77
    %p79 = scmp.ne.s32.totalorder %s68, %s71
    %p80 = scmp.eq.s32.totalorder %s13, 1
    %p81 = por %p79, %p80
    %p82 = scmp.ne.s32.totalorder %s71, %s72
    %p83 = scmp.eq.s32.totalorder %s13, 0
    %p84 = por %p82, %p83
    %p85 = scmp.ne.s32.totalorder %s71, %s72
    %p86 = scmp.eq.s32.totalorder %s14, 1
    %p87 = por %p85, %p86
    %p89 = scmp.ne.s32.totalorder %s72, %s88
    %p90 = scmp.eq.s32.totalorder %s14, 0
    %p91 = por %p89, %p90
    %s92 = ssub.s32 1, %s15
    %s93 = smul.u32 %s92, %s16
    %s94 = ssub.s32 0, %s16
    %s95 = smul.u32 %s15, %s94
    %s96 = sadd.s32 %s93, %s95
    %s97 = ssub.s32 1, %s27
    %s98 = smul.u32 %s97, %s23
    %s99 = ssub.s32 0, %s23
    %s100 = smul.u32 %s27, %s99
    %s101 = sadd.s32 %s98, %s100
    %s102 = ssub.s32 %s15, %s27
    %s103 = ssub.s32 %s96, %s101
    %s104 = sor.u32 %s102, %s103
    %p105 = scmp.eq.s32.totalorder %s104, 0
    %s107 = sadd.s32 %s106, 1
    %s108 = scalar_select %p105, %s106, %s107
    %p111 = pneg %p105
    %p112 = scmp.eq.s32.totalorder %s8, 1
    %p113 = por %p111, %p112
    %p114 = scmp.ne.s32.totalorder %s106, %s109
    %p115 = scmp.eq.s32.totalorder %s8, 0
    %p116 = por %p114, %p115
    %p117 = scmp.ne.s32.totalorder %s106, %s109
    %p118 = scmp.eq.s32.totalorder %s13, 1
    %p119 = por %p117, %p118
    %p120 = scmp.ne.s32.totalorder %s109, %s110
    %p121 = scmp.eq.s32.totalorder %s13, 0
    %p122 = por %p120, %p121
    %p123 = scmp.ne.s32.totalorder %s109, %s110
    %p124 = scmp.eq.s32.totalorder %s14, 1
    %p125 = por %p123, %p124
    %p127 = scmp.ne.s32.totalorder %s110, %s126
    %p128 = scmp.eq.s32.totalorder %s14, 0
    %p129 = por %p127, %p128
    %p130 = scmp.le.s32.totalorder 1, %s8
    %p131 = scmp.lt.s32.totalorder %s8, 3
    %p132 = pnand %p130, %p131
    %p133 = pneg %p132
    // Predicated region
    $region9: #{bilstm_decoder_forward.2} parent=5 // pred_check
      _
    $region10: #{bilstm_decoder_forward.2} parent=5 // pred_check_branch
      %135 = sbr.rel (%p132) target = $region12
    $region11: #{bilstm_decoder_forward.2} parent=5 // pred_region
      %s136 = ssub.s32 %s8, 1
    $region12: #{bilstm_decoder_forward.2} parent=5 // pred_fallthru
      _
    %p137 = scmp.lt.s32.totalorder %s8, 2
    // Predicated region
    $region13: #{bilstm_decoder_forward.2} parent=5 // pred_check
      %p138 = pneg %p137
    $region14: #{bilstm_decoder_forward.2} parent=5 // pred_check_branch
      %140 = sbr.rel (%p138) target = $region16
    $region15: #{bilstm_decoder_forward.2} parent=5 // pred_region
      // Predicated region
      $region17: #{bilstm_decoder_forward.2} parent=15 // pred_check
        %p141 = pneg %p52
      $region18: #{bilstm_decoder_forward.2} parent=15 // pred_check_branch
        %143 = sbr.rel (%p141) target = $region20
      $region19: #{bilstm_decoder_forward.2} parent=15 // pred_region
        %s144 = ssub.s32 1, %s15
        %s145 = smul.u32 %s144, %s16
        %s146 = ssub.s32 0, %s16
        %s147 = smul.u32 %s15, %s146
        %s148 = sadd.s32 %s145, %s147
        %s149 = smul.u32 8, %s148
        %p150 = scmp.lt.s32.totalorder %s15, 1
        %s151 = scalar_select %p150, %s15, 1
        %p152 = scmp.lt.s32.totalorder %s149, 7
        %s153 = scalar_select %p152, %s149, 7
        %s154 = smul.addr %s151, 8
        %s155 = sadd.s32 %s153, %s154
        %s156 = smul.addr %s155, 2
        %s157 = scalar_lea.vmem %s0, %s156
        %s158 = ssub.s32 1, %s15
        %s159 = smul.u32 %s158, %s16
        %s160 = ssub.s32 0, %s16
        %s161 = smul.u32 %s15, %s160
        %s162 = sadd.s32 %s159, %s161
        %s163 = smul.u32 8, %s162
      $region20: #{bilstm_decoder_forward.2} parent=15 // pred_fallthru
        _
      // Predicated region
      $region21: #{bilstm_decoder_forward.2} parent=15 // pred_check
        %p164 = pneg %p78
      $region22: #{bilstm_decoder_forward.2} parent=15 // pred_check_branch
        %166 = sbr.rel (%p164) target = $region24
      $region23: #{bilstm_decoder_forward.2} parent=15 // pred_region
        %p167 = scmp.lt.s32.totalorder %s15, 1
        %s168 = scalar_select %p167, %s15, 1
        %s169 = smul.addr %s168, 4
        %s170 = smul.addr %s169, 8
        %s171 = scalar_lea.vmem %s1, %s170
      $region24: #{bilstm_decoder_forward.2} parent=15 // pred_fallthru
        _
    $region16: #{bilstm_decoder_forward.2} parent=5 // pred_fallthru
      _
    %p172 = scmp.le.s32.totalorder 1, %s8
    %p173 = scmp.lt.s32.totalorder %s8, 3
    %p174 = pnand %p172, %p173
    %p175 = pneg %p174
    // Predicated region
    $region25: #{bilstm_decoder_forward.2} parent=5 // pred_check
      _
    $region26: #{bilstm_decoder_forward.2} parent=5 // pred_check_branch
      %177 = sbr.rel (%p174) target = $region28
    $region27: #{bilstm_decoder_forward.2} parent=5 // pred_region
      %s178 = ssub.s32 %s8, 1
      %s179 = ssub.s32 1, %s17
      %s180 = smul.u32 %s179, %s18
      %s181 = ssub.s32 0, %s18
      %s182 = smul.u32 %s17, %s181
      %s183 = sadd.s32 %s180, %s182
      %s184 = smul.u32 8, %s183
      %p185 = scmp.lt.s32.totalorder %s17, 1
      %s186 = scalar_select %p185, %s17, 1
      %p187 = scmp.lt.s32.totalorder %s184, 7
      %s188 = scalar_select %p187, %s184, 7
      %s189 = smul.addr %s186, 8
      %s190 = sadd.s32 %s188, %s189
      %s191 = smul.addr %s190, 2
      %s192 = scalar_lea.vmem %s0, %s191
      %p193 = pneg %p58
      %p194 = pneg %p55
      %p195 = scmp.lt.s32.totalorder %s17, 1
      %s196 = scalar_select %p195, %s17, 1
      %s197 = smul.addr %s196, 4
      %s198 = smul.addr %s197, 8
      %s199 = scalar_lea.vmem %s1, %s198
      %p200 = pneg %p84
      %p201 = pneg %p81
      %p202 = pneg %p122
      %p203 = pneg %p119
      %s204 = ssub.s32 1, %s17
      %s205 = smul.u32 %s204, %s18
      %s206 = ssub.s32 0, %s18
      %s207 = smul.u32 %s17, %s206
      %s208 = sadd.s32 %s205, %s207
      %s209 = smul.u32 8, %s208
      %p210 = scmp.lt.s32.totalorder %s17, 1
      %s211 = scalar_select %p210, %s17, 1
      %p212 = scmp.lt.s32.totalorder %s209, 7
      %s213 = scalar_select %p212, %s209, 7
      %s214 = smul.addr %s211, 8
      %s215 = sadd.s32 %s213, %s214
      %s216 = smul.addr %s215, 2
      %s217 = scalar_lea.vmem %s2, %s216
      %s218 = ssub.s32 1, %s17
      %s219 = smul.u32 %s218, %s18
      %s220 = ssub.s32 0, %s18
      %s221 = smul.u32 %s17, %s220
      %s222 = sadd.s32 %s219, %s221
      %s223 = smul.u32 8, %s222
      %p224 = scmp.lt.s32.totalorder %s17, 1
      %s225 = scalar_select %p224, %s17, 1
      %p226 = scmp.lt.s32.totalorder %s223, 7
      %s227 = scalar_select %p226, %s223, 7
      %s228 = smul.addr %s225, 8
      %s229 = sadd.s32 %s227, %s228
      %s230 = smul.addr %s229, 2
      %s231 = scalar_lea.vmem %s0, %s230
      %s232 = ssub.s32 1, %s17
      %s233 = smul.u32 %s232, %s18
      %s234 = ssub.s32 0, %s18
      %s235 = smul.u32 %s17, %s234
      %s236 = sadd.s32 %s233, %s235
      %s237 = smul.u32 8, %s236
      %p238 = scmp.lt.s32.totalorder %s17, 1
      %s239 = scalar_select %p238, %s17, 1
      %s240 = smul.addr %s239, 4
      %s241 = smul.addr %s240, 8
      %s242 = scalar_lea.vmem %s1, %s241
      %s243 = ssub.s32 1, %s17
      %s244 = smul.u32 %s243, %s18
      %s245 = ssub.s32 0, %s18
      %s246 = smul.u32 %s17, %s245
      %s247 = sadd.s32 %s244, %s246
      %s248 = smul.u32 8, %s247
      %p249 = scmp.lt.s32.totalorder %s17, 1
      %s250 = scalar_select %p249, %s17, 1
      %p251 = scmp.lt.s32.totalorder %s248, 7
      %s252 = scalar_select %p251, %s248, 7
      %s253 = smul.addr %s250, 8
      %s254 = sadd.s32 %s252, %s253
      %s255 = smul.addr %s254, 2
      %s256 = scalar_lea.vmem %s2, %s255
      %s257 = ssub.s32 1, %s17
      %s258 = smul.u32 %s257, %s18
      %s259 = ssub.s32 0, %s18
      %s260 = smul.u32 %s17, %s259
      %s261 = sadd.s32 %s258, %s260
      %s262 = smul.u32 8, %s261
      %p263 = scmp.eq.s32.totalorder %s18, 0
      // Predicated region
      $region29: #{bilstm_decoder_forward.2} parent=27 // pred_check
        %p264 = pneg %p263
      $region30: #{bilstm_decoder_forward.2} parent=27 // pred_check_branch
        %266 = sbr.rel (%p264) target = $region32
      $region31: #{bilstm_decoder_forward.2} parent=27 // pred_region
        %vm267 = vcmask 254976
        %268 = vst.msk [vmem:[#allocation2] sm:$0x3] %vm267, 0.0
        %269 = vst.msk [vmem:[#allocation3] sm:$0x3] %vm267, 0.0
      $region32: #{bilstm_decoder_forward.2} parent=27 // pred_fallthru
        _
      %v270 = vld [vmem:[%s242] sm:$0xff]
      %v271 = vld [vmem:[%s242 + $0x8] sm:$0xff]
      %v272 = vld [vmem:[%s242 + $0x10] sm:$0xff]
      %v273 = vld [vmem:[%s242 + $0x18] sm:$0xff]
      %v274 = vld [vmem:[#allocation2] sm:$0x3]
      %v275 = vld [vmem:[#allocation3] sm:$0x3]
      %s276 = smul.u32 %s17, 7
      %s277 = smul.u32 %s276, 2
      %s278 = scalar_lea.vmem %s231, %s277
      %v279 = vld [vmem:[%s278] sm:$0x3]
      %vm280 = vcmask 261120
      %v282 = vsel %vm280, %v274, 0
      %284 = vmatprep.subr.mxu0 0.0
      %285 = vmatpush1.msra.mxu0 %v270
      %286 = vmatprep.subr.mxu0 0.0
      %287 = vmatpush1.msra.mxu0 %v271
      %288 = vmatprep.subr.mxu0 0.0
      %289 = vmatpush1.msra.mxu0 %v272
      %290 = vmatprep.subr.mxu0 0.0
      %291 = vmatpush1.msra.mxu0 %v273
      %292 = vmatprep.subr.mxu0 0.0
      %293 = vmatpush1.msra.mxu0 0.0
      %294 = vmatprep.subr.mxu0 0.0
      %295 = vmatpush1.msra.mxu0 0.0
      %296 = vmatprep.subr.mxu0 0.0
      %297 = vmatpush1.msra.mxu0 0.0
      %298 = vmatprep.subr.mxu0 0.0
      %299 = vmatpush1.msra.mxu0 0.0
      %300 = vmatprep.subr.mxu0 0.0
      %301 = vmatpush1.msra.mxu0 0.0
      %302 = vmatprep.subr.mxu0 0.0
      %303 = vmatpush1.msra.mxu0 0.0
      %304 = vmatprep.subr.mxu0 0.0
      %305 = vmatpush1.msra.mxu0 0.0
      %306 = vmatprep.subr.mxu0 0.0
      %307 = vmatpush1.msra.mxu0 0.0
      %308 = vmatprep.subr.mxu0 0.0
      %309 = vmatpush1.msra.mxu0 0.0
      %310 = vmatprep.subr.mxu0 0.0
      %311 = vmatpush1.msra.mxu0 0.0
      %312 = vmatprep.subr.mxu0 0.0
      %313 = vmatpush1.msra.mxu0 0.0
      %314 = vmatprep.subr.mxu0 0.0
      %315 = vmatpush1.msra.mxu0 0.0
      %316 = vmatprep.subr.mxu0 0.0
      %317 = vmatpush1.msra.mxu0 0.0
      %318 = vmatprep.subr.mxu0 0.0
      %319 = vmatpush1.msra.mxu0 0.0
      %320 = vmatprep.subr.mxu0 0.0
      %321 = vmatpush1.msra.mxu0 0.0
      %322 = vmatprep.subr.mxu0 0.0
      %323 = vmatpush1.msra.mxu0 0.0
      %324 = vmatprep.subr.mxu0 0.0
      %325 = vmatpush1.msra.mxu0 0.0
      %326 = vmatprep.subr.mxu0 0.0
      %327 = vmatpush1.msra.mxu0 0.0
      %328 = vmatprep.subr.mxu0 0.0
      %329 = vmatpush1.msra.mxu0 0.0
      %330 = vmatprep.subr.mxu0 0.0
      %331 = vmatpush1.msra.mxu0 0.0
      %332 = vmatprep.subr.mxu0 0.0
      %333 = vmatpush1.msra.mxu0 0.0
      %334 = vmatprep.subr.mxu0 0.0
      %335 = vmatpush1.msra.mxu0 0.0
      %336 = vmatprep.subr.mxu0 0.0
      %337 = vmatpush1.msra.mxu0 0.0
      %338 = vmatprep.subr.mxu0 0.0
      %339 = vmatpush1.msra.mxu0 0.0
      %340 = vmatprep.subr.mxu0 0.0
      %341 = vmatpush1.msra.mxu0 0.0
      %342 = vmatprep.subr.mxu0 0.0
      %343 = vmatpush1.msra.mxu0 0.0
      %344 = vmatprep.subr.mxu0 0.0
      %345 = vmatpush1.msra.mxu0 0.0
      %346 = vmatprep.subr.mxu0 0.0
      %347 = vmatpush1.msra.mxu0 0.0
      %348 = vmatprep.mubr.f32.mxu0 0.0
      %349 = vmatmul.mubr.f32.gmra.mrb[0].mxu0 %v282
      %v350 = vpop.f32.mrb[0].mxu0
      %v351 = vadd.f32 0.0, %v350
      %v352 = vpop.f32.mrb[0].mxu0
      %353 = vdwg.mxu0
      %v354 = vadd.f32 %v279, %v351
      %v355 = vxor.u32 %v354, 2147483648
      %v356 = vmul.f32 %v355, 1.442695
      %v357 = vpow.pop %v356
      %v358 = vadd.f32 %v357, 1.0
      %v359 = vrcp.pop %v358
      %v360 = vmul.f32 1.0, %v359
      %v361 = vtanh.pop %v354
      %363 = vrot.lane.b32.xlu0 %v275, 32
      %v364 = vpop.permute.xlu0 %363
      %v366 = vmul.f32 %v360, %v364
      %368 = vrot.lane.b32.xlu0 %v361, 64
      %v369 = vpop.permute.xlu0 %368
      %v371 = vmul.f32 %v360, %v369
      %373 = vrot.lane.b32.xlu0 %v371, 32
      %v374 = vpop.permute.xlu0 %373
      %v376 = vadd.f32 %v366, %v374
      %v377 = vtanh.pop %v376
      %379 = vrot.lane.b32.xlu0 %v377, 64
      %v380 = vpop.permute.xlu0 %379
      %v382 = vmul.f32 %v360, %v380
      %384 = vrot.lane.b32.xlu0 %v382, 32
      %v385 = vpop.permute.xlu0 %384
      %s387 = scalar_lea.vmem %s256, %s277
      %vm388 = vcmask 254976
      %389 = vst.msk [vmem:[%s387] sm:$0x3] %vm388, %v385
      %s390 = ssub.s32 1, %s17
      %s391 = smul.u32 %s17, 6
      %s392 = sadd.s32 %s390, %s391
      %s393 = smul.u32 %s392, 2
      %s394 = scalar_lea.vmem %s231, %s393
      %v395 = vld [vmem:[%s394] sm:$0x3]
      %v396 = vsel %vm280, %v385, 0
      %398 = vmatprep.subr.mxu0 0.0
      %399 = vmatpush1.msra.mxu0 %v270
      %400 = vmatprep.subr.mxu0 0.0
      %401 = vmatpush1.msra.mxu0 %v271
      %402 = vmatprep.subr.mxu0 0.0
      %403 = vmatpush1.msra.mxu0 %v272
      %404 = vmatprep.subr.mxu0 0.0
      %405 = vmatpush1.msra.mxu0 %v273
      %406 = vmatprep.subr.mxu0 0.0
      %407 = vmatpush1.msra.mxu0 0.0
      %408 = vmatprep.subr.mxu0 0.0
      %409 = vmatpush1.msra.mxu0 0.0
      %410 = vmatprep.subr.mxu0 0.0
      %411 = vmatpush1.msra.mxu0 0.0
      %412 = vmatprep.subr.mxu0 0.0
      %413 = vmatpush1.msra.mxu0 0.0
      %414 = vmatprep.subr.mxu0 0.0
      %415 = vmatpush1.msra.mxu0 0.0
      %416 = vmatprep.subr.mxu0 0.0
      %417 = vmatpush1.msra.mxu0 0.0
      %418 = vmatprep.subr.mxu0 0.0
      %419 = vmatpush1.msra.mxu0 0.0
      %420 = vmatprep.subr.mxu0 0.0
      %421 = vmatpush1.msra.mxu0 0.0
      %422 = vmatprep.subr.mxu0 0.0
      %423 = vmatpush1.msra.mxu0 0.0
      %424 = vmatprep.subr.mxu0 0.0
      %425 = vmatpush1.msra.mxu0 0.0
      %426 = vmatprep.subr.mxu0 0.0
      %427 = vmatpush1.msra.mxu0 0.0
      %428 = vmatprep.subr.mxu0 0.0
      %429 = vmatpush1.msra.mxu0 0.0
      %430 = vmatprep.subr.mxu0 0.0
      %431 = vmatpush1.msra.mxu0 0.0
      %432 = vmatprep.subr.mxu0 0.0
      %433 = vmatpush1.msra.mxu0 0.0
      %434 = vmatprep.subr.mxu0 0.0
      %435 = vmatpush1.msra.mxu0 0.0
      %436 = vmatprep.subr.mxu0 0.0
      %437 = vmatpush1.msra.mxu0 0.0
      %438 = vmatprep.subr.mxu0 0.0
      %439 = vmatpush1.msra.mxu0 0.0
      %440 = vmatprep.subr.mxu0 0.0
      %441 = vmatpush1.msra.mxu0 0.0
      %442 = vmatprep.subr.mxu0 0.0
      %443 = vmatpush1.msra.mxu0 0.0
      %444 = vmatprep.subr.mxu0 0.0
      %445 = vmatpush1.msra.mxu0 0.0
      %446 = vmatprep.subr.mxu0 0.0
      %447 = vmatpush1.msra.mxu0 0.0
      %448 = vmatprep.subr.mxu0 0.0
      %449 = vmatpush1.msra.mxu0 0.0
      %450 = vmatprep.subr.mxu0 0.0
      %451 = vmatpush1.msra.mxu0 0.0
      %452 = vmatprep.subr.mxu0 0.0
      %453 = vmatpush1.msra.mxu0 0.0
      %454 = vmatprep.subr.mxu0 0.0
      %455 = vmatpush1.msra.mxu0 0.0
      %456 = vmatprep.subr.mxu0 0.0
      %457 = vmatpush1.msra.mxu0 0.0
      %458 = vmatprep.subr.mxu0 0.0
      %459 = vmatpush1.msra.mxu0 0.0
      %460 = vmatprep.subr.mxu0 0.0
      %461 = vmatpush1.msra.mxu0 0.0
      %462 = vmatprep.mubr.f32.mxu0 0.0
      %463 = vmatmul.mubr.f32.gmra.mrb[0].mxu0 %v396
      %v464 = vpop.f32.mrb[0].mxu0
      %v465 = vadd.f32 0.0, %v464
      %v466 = vpop.f32.mrb[0].mxu0
      %467 = vdwg.mxu0
      %v468 = vadd.f32 %v395, %v465
      %v469 = vxor.u32 %v468, 2147483648
      %v470 = vmul.f32 %v469, 1.442695
      %v471 = vpow.pop %v470
      %v472 = vadd.f32 %v471, 1.0
      %v473 = vrcp.pop %v472
      %v474 = vmul.f32 1.0, %v473
      %v475 = vtanh.pop %v468
      %v476 = vmul.f32 %v474, %v376
      %478 = vrot.lane.b32.xlu0 %v475, 64
      %v479 = vpop.permute.xlu0 %478
      %v481 = vmul.f32 %v474, %v479
      %483 = vrot.lane.b32.xlu0 %v481, 32
      %v484 = vpop.permute.xlu0 %483
      %v486 = vadd.f32 %v476, %v484
      %v487 = vtanh.pop %v486
      %489 = vrot.lane.b32.xlu0 %v487, 64
      %v490 = vpop.permute.xlu0 %489
      %v492 = vmul.f32 %v474, %v490
      %494 = vrot.lane.b32.xlu0 %v492, 32
      %v495 = vpop.permute.xlu0 %494
      %s497 = scalar_lea.vmem %s256, %s393
      %498 = vst.msk [vmem:[%s497] sm:$0x3] %vm388, %v495
      %s499 = smul.u32 %s390, 2
      %s500 = smul.u32 %s17, 5
      %s501 = sadd.s32 %s499, %s500
      %s502 = smul.u32 %s501, 2
      %s503 = scalar_lea.vmem %s231, %s502
      %v504 = vld [vmem:[%s503] sm:$0x3]
      %v505 = vsel %vm280, %v495, 0
      %507 = vmatprep.subr.mxu0 0.0
      %508 = vmatpush1.msra.mxu0 %v270
      %509 = vmatprep.subr.mxu0 0.0
      %510 = vmatpush1.msra.mxu0 %v271
      %511 = vmatprep.subr.mxu0 0.0
      %512 = vmatpush1.msra.mxu0 %v272
      %513 = vmatprep.subr.mxu0 0.0
      %514 = vmatpush1.msra.mxu0 %v273
      %515 = vmatprep.subr.mxu0 0.0
      %516 = vmatpush1.msra.mxu0 0.0
      %517 = vmatprep.subr.mxu0 0.0
      %518 = vmatpush1.msra.mxu0 0.0
      %519 = vmatprep.subr.mxu0 0.0
      %520 = vmatpush1.msra.mxu0 0.0
      %521 = vmatprep.subr.mxu0 0.0
      %522 = vmatpush1.msra.mxu0 0.0
      %523 = vmatprep.subr.mxu0 0.0
      %524 = vmatpush1.msra.mxu0 0.0
      %525 = vmatprep.subr.mxu0 0.0
      %526 = vmatpush1.msra.mxu0 0.0
      %527 = vmatprep.subr.mxu0 0.0
      %528 = vmatpush1.msra.mxu0 0.0
      %529 = vmatprep.subr.mxu0 0.0
      %530 = vmatpush1.msra.mxu0 0.0
      %531 = vmatprep.subr.mxu0 0.0
      %532 = vmatpush1.msra.mxu0 0.0
      %533 = vmatprep.subr.mxu0 0.0
      %534 = vmatpush1.msra.mxu0 0.0
      %535 = vmatprep.subr.mxu0 0.0
      %536 = vmatpush1.msra.mxu0 0.0
      %537 = vmatprep.subr.mxu0 0.0
      %538 = vmatpush1.msra.mxu0 0.0
      %539 = vmatprep.subr.mxu0 0.0
      %540 = vmatpush1.msra.mxu0 0.0
      %541 = vmatprep.subr.mxu0 0.0
      %542 = vmatpush1.msra.mxu0 0.0
      %543 = vmatprep.subr.mxu0 0.0
      %544 = vmatpush1.msra.mxu0 0.0
      %545 = vmatprep.subr.mxu0 0.0
      %546 = vmatpush1.msra.mxu0 0.0
      %547 = vmatprep.subr.mxu0 0.0
      %548 = vmatpush1.msra.mxu0 0.0
      %549 = vmatprep.subr.mxu0 0.0
      %550 = vmatpush1.msra.mxu0 0.0
      %551 = vmatprep.subr.mxu0 0.0
      %552 = vmatpush1.msra.mxu0 0.0
      %553 = vmatprep.subr.mxu0 0.0
      %554 = vmatpush1.msra.mxu0 0.0
      %555 = vmatprep.subr.mxu0 0.0
      %556 = vmatpush1.msra.mxu0 0.0
      %557 = vmatprep.subr.mxu0 0.0
      %558 = vmatpush1.msra.mxu0 0.0
      %559 = vmatprep.subr.mxu0 0.0
      %560 = vmatpush1.msra.mxu0 0.0
      %561 = vmatprep.subr.mxu0 0.0
      %562 = vmatpush1.msra.mxu0 0.0
      %563 = vmatprep.subr.mxu0 0.0
      %564 = vmatpush1.msra.mxu0 0.0
      %565 = vmatprep.subr.mxu0 0.0
      %566 = vmatpush1.msra.mxu0 0.0
      %567 = vmatprep.subr.mxu0 0.0
      %568 = vmatpush1.msra.mxu0 0.0
      %569 = vmatprep.subr.mxu0 0.0
      %570 = vmatpush1.msra.mxu0 0.0
      %571 = vmatprep.mubr.f32.mxu0 0.0
      %572 = vmatmul.mubr.f32.gmra.mrb[0].mxu0 %v505
      %v573 = vpop.f32.mrb[0].mxu0
      %v574 = vadd.f32 0.0, %v573
      %v575 = vpop.f32.mrb[0].mxu0
      %576 = vdwg.mxu0
      %v577 = vadd.f32 %v504, %v574
      %v578 = vxor.u32 %v577, 2147483648
      %v579 = vmul.f32 %v578, 1.442695
      %v580 = vpow.pop %v579
      %v581 = vadd.f32 %v580, 1.0
      %v582 = vrcp.pop %v581
      %v583 = vmul.f32 1.0, %v582
      %v584 = vtanh.pop %v577
      %v585 = vmul.f32 %v583, %v486
      %587 = vrot.lane.b32.xlu0 %v584, 64
      %v588 = vpop.permute.xlu0 %587
      %v590 = vmul.f32 %v583, %v588
      %592 = vrot.lane.b32.xlu0 %v590, 32
      %v593 = vpop.permute.xlu0 %592
      %v595 = vadd.f32 %v585, %v593
      %v596 = vtanh.pop %v595
      %598 = vrot.lane.b32.xlu0 %v596, 64
      %v599 = vpop.permute.xlu0 %598
      %v601 = vmul.f32 %v583, %v599
      %603 = vrot.lane.b32.xlu0 %v601, 32
      %v604 = vpop.permute.xlu0 %603
      %s606 = scalar_lea.vmem %s256, %s502
      %607 = vst.msk [vmem:[%s606] sm:$0x3] %vm388, %v604
      %s608 = smul.u32 %s390, 3
      %s609 = smul.u32 %s17, 4
      %s610 = sadd.s32 %s608, %s609
      %s611 = smul.u32 %s610, 2
      %s612 = scalar_lea.vmem %s231, %s611
      %v613 = vld [vmem:[%s612] sm:$0x3]
      %v614 = vsel %vm280, %v604, 0
      %616 = vmatprep.subr.mxu0 0.0
      %617 = vmatpush1.msra.mxu0 %v270
      %618 = vmatprep.subr.mxu0 0.0
      %619 = vmatpush1.msra.mxu0 %v271
      %620 = vmatprep.subr.mxu0 0.0
      %621 = vmatpush1.msra.mxu0 %v272
      %622 = vmatprep.subr.mxu0 0.0
      %623 = vmatpush1.msra.mxu0 %v273
      %624 = vmatprep.subr.mxu0 0.0
      %625 = vmatpush1.msra.mxu0 0.0
      %626 = vmatprep.subr.mxu0 0.0
      %627 = vmatpush1.msra.mxu0 0.0
      %628 = vmatprep.subr.mxu0 0.0
      %629 = vmatpush1.msra.mxu0 0.0
      %630 = vmatprep.subr.mxu0 0.0
      %631 = vmatpush1.msra.mxu0 0.0
      %632 = vmatprep.subr.mxu0 0.0
      %633 = vmatpush1.msra.mxu0 0.0
      %634 = vmatprep.subr.mxu0 0.0
      %635 = vmatpush1.msra.mxu0 0.0
      %636 = vmatprep.subr.mxu0 0.0
      %637 = vmatpush1.msra.mxu0 0.0
      %638 = vmatprep.subr.mxu0 0.0
      %639 = vmatpush1.msra.mxu0 0.0
      %640 = vmatprep.subr.mxu0 0.0
      %641 = vmatpush1.msra.mxu0 0.0
      %642 = vmatprep.subr.mxu0 0.0
      %643 = vmatpush1.msra.mxu0 0.0
      %644 = vmatprep.subr.mxu0 0.0
      %645 = vmatpush1.msra.mxu0 0.0
      %646 = vmatprep.subr.mxu0 0.0
      %647 = vmatpush1.msra.mxu0 0.0
      %648 = vmatprep.subr.mxu0 0.0
      %649 = vmatpush1.msra.mxu0 0.0
      %650 = vmatprep.subr.mxu0 0.0
      %651 = vmatpush1.msra.mxu0 0.0
      %652 = vmatprep.subr.mxu0 0.0
      %653 = vmatpush1.msra.mxu0 0.0
      %654 = vmatprep.subr.mxu0 0.0
      %655 = vmatpush1.msra.mxu0 0.0
      %656 = vmatprep.subr.mxu0 0.0
      %657 = vmatpush1.msra.mxu0 0.0
      %658 = vmatprep.subr.mxu0 0.0
      %659 = vmatpush1.msra.mxu0 0.0
      %660 = vmatprep.subr.mxu0 0.0
      %661 = vmatpush1.msra.mxu0 0.0
      %662 = vmatprep.subr.mxu0 0.0
      %663 = vmatpush1.msra.mxu0 0.0
      %664 = vmatprep.subr.mxu0 0.0
      %665 = vmatpush1.msra.mxu0 0.0
      %666 = vmatprep.subr.mxu0 0.0
      %667 = vmatpush1.msra.mxu0 0.0
      %668 = vmatprep.subr.mxu0 0.0
      %669 = vmatpush1.msra.mxu0 0.0
      %670 = vmatprep.subr.mxu0 0.0
      %671 = vmatpush1.msra.mxu0 0.0
      %672 = vmatprep.subr.mxu0 0.0
      %673 = vmatpush1.msra.mxu0 0.0
      %674 = vmatprep.subr.mxu0 0.0
      %675 = vmatpush1.msra.mxu0 0.0
      %676 = vmatprep.subr.mxu0 0.0
      %677 = vmatpush1.msra.mxu0 0.0
      %678 = vmatprep.subr.mxu0 0.0
      %679 = vmatpush1.msra.mxu0 0.0
      %680 = vmatprep.mubr.f32.mxu0 0.0
      %681 = vmatmul.mubr.f32.gmra.mrb[0].mxu0 %v614
      %v682 = vpop.f32.mrb[0].mxu0
      %v683 = vadd.f32 0.0, %v682
      %v684 = vpop.f32.mrb[0].mxu0
      %685 = vdwg.mxu0
      %v686 = vadd.f32 %v613, %v683
      %v687 = vxor.u32 %v686, 2147483648
      %v688 = vmul.f32 %v687, 1.442695
      %v689 = vpow.pop %v688
      %v690 = vadd.f32 %v689, 1.0
      %v691 = vrcp.pop %v690
      %v692 = vmul.f32 1.0, %v691
      %v693 = vtanh.pop %v686
      %v694 = vmul.f32 %v692, %v595
      %696 = vrot.lane.b32.xlu0 %v693, 64
      %v697 = vpop.permute.xlu0 %696
      %v699 = vmul.f32 %v692, %v697
      %701 = vrot.lane.b32.xlu0 %v699, 32
      %v702 = vpop.permute.xlu0 %701
      %v704 = vadd.f32 %v694, %v702
      %v705 = vtanh.pop %v704
      %707 = vrot.lane.b32.xlu0 %v705, 64
      %v708 = vpop.permute.xlu0 %707
      %v710 = vmul.f32 %v692, %v708
      %712 = vrot.lane.b32.xlu0 %v710, 32
      %v713 = vpop.permute.xlu0 %712
      %s715 = scalar_lea.vmem %s256, %s611
      %716 = vst.msk [vmem:[%s715] sm:$0x3] %vm388, %v713
      %s717 = smul.u32 %s390, 4
      %s718 = smul.u32 %s17, 3
      %s719 = sadd.s32 %s717, %s718
      %s720 = smul.u32 %s719, 2
      %s721 = scalar_lea.vmem %s231, %s720
      %v722 = vld [vmem:[%s721] sm:$0x3]
      %v723 = vsel %vm280, %v713, 0
      %725 = vmatprep.subr.mxu0 0.0
      %726 = vmatpush1.msra.mxu0 %v270
      %727 = vmatprep.subr.mxu0 0.0
      %728 = vmatpush1.msra.mxu0 %v271
      %729 = vmatprep.subr.mxu0 0.0
      %730 = vmatpush1.msra.mxu0 %v272
      %731 = vmatprep.subr.mxu0 0.0
      %732 = vmatpush1.msra.mxu0 %v273
      %733 = vmatprep.subr.mxu0 0.0
      %734 = vmatpush1.msra.mxu0 0.0
      %735 = vmatprep.subr.mxu0 0.0
      %736 = vmatpush1.msra.mxu0 0.0
      %737 = vmatprep.subr.mxu0 0.0
      %738 = vmatpush1.msra.mxu0 0.0
      %739 = vmatprep.subr.mxu0 0.0
      %740 = vmatpush1.msra.mxu0 0.0
      %741 = vmatprep.subr.mxu0 0.0
      %742 = vmatpush1.msra.mxu0 0.0
      %743 = vmatprep.subr.mxu0 0.0
      %744 = vmatpush1.msra.mxu0 0.0
      %745 = vmatprep.subr.mxu0 0.0
      %746 = vmatpush1.msra.mxu0 0.0
      %747 = vmatprep.subr.mxu0 0.0
      %748 = vmatpush1.msra.mxu0 0.0
      %749 = vmatprep.subr.mxu0 0.0
      %750 = vmatpush1.msra.mxu0 0.0
      %751 = vmatprep.subr.mxu0 0.0
      %752 = vmatpush1.msra.mxu0 0.0
      %753 = vmatprep.subr.mxu0 0.0
      %754 = vmatpush1.msra.mxu0 0.0
      %755 = vmatprep.subr.mxu0 0.0
      %756 = vmatpush1.msra.mxu0 0.0
      %757 = vmatprep.subr.mxu0 0.0
      %758 = vmatpush1.msra.mxu0 0.0
      %759 = vmatprep.subr.mxu0 0.0
      %760 = vmatpush1.msra.mxu0 0.0
      %761 = vmatprep.subr.mxu0 0.0
      %762 = vmatpush1.msra.mxu0 0.0
      %763 = vmatprep.subr.mxu0 0.0
      %764 = vmatpush1.msra.mxu0 0.0
      %765 = vmatprep.subr.mxu0 0.0
      %766 = vmatpush1.msra.mxu0 0.0
      %767 = vmatprep.subr.mxu0 0.0
      %768 = vmatpush1.msra.mxu0 0.0
      %769 = vmatprep.subr.mxu0 0.0
      %770 = vmatpush1.msra.mxu0 0.0
      %771 = vmatprep.subr.mxu0 0.0
      %772 = vmatpush1.msra.mxu0 0.0
      %773 = vmatprep.subr.mxu0 0.0
      %774 = vmatpush1.msra.mxu0 0.0
      %775 = vmatprep.subr.mxu0 0.0
      %776 = vmatpush1.msra.mxu0 0.0
      %777 = vmatprep.subr.mxu0 0.0
      %778 = vmatpush1.msra.mxu0 0.0
      %779 = vmatprep.subr.mxu0 0.0
      %780 = vmatpush1.msra.mxu0 0.0
      %781 = vmatprep.subr.mxu0 0.0
      %782 = vmatpush1.msra.mxu0 0.0
      %783 = vmatprep.subr.mxu0 0.0
      %784 = vmatpush1.msra.mxu0 0.0
      %785 = vmatprep.subr.mxu0 0.0
      %786 = vmatpush1.msra.mxu0 0.0
      %787 = vmatprep.subr.mxu0 0.0
      %788 = vmatpush1.msra.mxu0 0.0
      %789 = vmatprep.mubr.f32.mxu0 0.0
      %790 = vmatmul.mubr.f32.gmra.mrb[0].mxu0 %v723
      %v791 = vpop.f32.mrb[0].mxu0
      %v792 = vadd.f32 0.0, %v791
      %v793 = vpop.f32.mrb[0].mxu0
      %794 = vdwg.mxu0
      %v795 = vadd.f32 %v722, %v792
      %v796 = vxor.u32 %v795, 2147483648
      %v797 = vmul.f32 %v796, 1.442695
      %v798 = vpow.pop %v797
      %v799 = vadd.f32 %v798, 1.0
      %v800 = vrcp.pop %v799
      %v801 = vmul.f32 1.0, %v800
      %v802 = vtanh.pop %v795
      %v803 = vmul.f32 %v801, %v704
      %805 = vrot.lane.b32.xlu0 %v802, 64
      %v806 = vpop.permute.xlu0 %805
      %v808 = vmul.f32 %v801, %v806
      %810 = vrot.lane.b32.xlu0 %v808, 32
      %v811 = vpop.permute.xlu0 %810
      %v813 = vadd.f32 %v803, %v811
      %v814 = vtanh.pop %v813
      %816 = vrot.lane.b32.xlu0 %v814, 64
      %v817 = vpop.permute.xlu0 %816
      %v819 = vmul.f32 %v801, %v817
      %821 = vrot.lane.b32.xlu0 %v819, 32
      %v822 = vpop.permute.xlu0 %821
      %s824 = scalar_lea.vmem %s256, %s720
      %825 = vst.msk [vmem:[%s824] sm:$0x3] %vm388, %v822
      %s826 = smul.u32 %s390, 5
      %s827 = smul.u32 %s17, 2
      %s828 = sadd.s32 %s826, %s827
      %s829 = smul.u32 %s828, 2
      %s830 = scalar_lea.vmem %s231, %s829
      %v831 = vld [vmem:[%s830] sm:$0x3]
      %v832 = vsel %vm280, %v822, 0
      %834 = vmatprep.subr.mxu0 0.0
      %835 = vmatpush1.msra.mxu0 %v270
      %836 = vmatprep.subr.mxu0 0.0
      %837 = vmatpush1.msra.mxu0 %v271
      %838 = vmatprep.subr.mxu0 0.0
      %839 = vmatpush1.msra.mxu0 %v272
      %840 = vmatprep.subr.mxu0 0.0
      %841 = vmatpush1.msra.mxu0 %v273
      %842 = vmatprep.subr.mxu0 0.0
      %843 = vmatpush1.msra.mxu0 0.0
      %844 = vmatprep.subr.mxu0 0.0
      %845 = vmatpush1.msra.mxu0 0.0
      %846 = vmatprep.subr.mxu0 0.0
      %847 = vmatpush1.msra.mxu0 0.0
      %848 = vmatprep.subr.mxu0 0.0
      %849 = vmatpush1.msra.mxu0 0.0
      %850 = vmatprep.subr.mxu0 0.0
      %851 = vmatpush1.msra.mxu0 0.0
      %852 = vmatprep.subr.mxu0 0.0
      %853 = vmatpush1.msra.mxu0 0.0
      %854 = vmatprep.subr.mxu0 0.0
      %855 = vmatpush1.msra.mxu0 0.0
      %856 = vmatprep.subr.mxu0 0.0
      %857 = vmatpush1.msra.mxu0 0.0
      %858 = vmatprep.subr.mxu0 0.0
      %859 = vmatpush1.msra.mxu0 0.0
      %860 = vmatprep.subr.mxu0 0.0
      %861 = vmatpush1.msra.mxu0 0.0
      %862 = vmatprep.subr.mxu0 0.0
      %863 = vmatpush1.msra.mxu0 0.0
      %864 = vmatprep.subr.mxu0 0.0
      %865 = vmatpush1.msra.mxu0 0.0
      %866 = vmatprep.subr.mxu0 0.0
      %867 = vmatpush1.msra.mxu0 0.0
      %868 = vmatprep.subr.mxu0 0.0
      %869 = vmatpush1.msra.mxu0 0.0
      %870 = vmatprep.subr.mxu0 0.0
      %871 = vmatpush1.msra.mxu0 0.0
      %872 = vmatprep.subr.mxu0 0.0
      %873 = vmatpush1.msra.mxu0 0.0
      %874 = vmatprep.subr.mxu0 0.0
      %875 = vmatpush1.msra.mxu0 0.0
      %876 = vmatprep.subr.mxu0 0.0
      %877 = vmatpush1.msra.mxu0 0.0
      %878 = vmatprep.subr.mxu0 0.0
      %879 = vmatpush1.msra.mxu0 0.0
      %880 = vmatprep.subr.mxu0 0.0
      %881 = vmatpush1.msra.mxu0 0.0
      %882 = vmatprep.subr.mxu0 0.0
      %883 = vmatpush1.msra.mxu0 0.0
      %884 = vmatprep.subr.mxu0 0.0
      %885 = vmatpush1.msra.mxu0 0.0
      %886 = vmatprep.subr.mxu0 0.0
      %887 = vmatpush1.msra.mxu0 0.0
      %888 = vmatprep.subr.mxu0 0.0
      %889 = vmatpush1.msra.mxu0 0.0
      %890 = vmatprep.subr.mxu0 0.0
      %891 = vmatpush1.msra.mxu0 0.0
      %892 = vmatprep.subr.mxu0 0.0
      %893 = vmatpush1.msra.mxu0 0.0
      %894 = vmatprep.subr.mxu0 0.0
      %895 = vmatpush1.msra.mxu0 0.0
      %896 = vmatprep.subr.mxu0 0.0
      %897 = vmatpush1.msra.mxu0 0.0
      %898 = vmatprep.mubr.f32.mxu0 0.0
      %899 = vmatmul.mubr.f32.gmra.mrb[0].mxu0 %v832
      %v900 = vpop.f32.mrb[0].mxu0
      %v901 = vadd.f32 0.0, %v900
      %v902 = vpop.f32.mrb[0].mxu0
      %903 = vdwg.mxu0
      %v904 = vadd.f32 %v831, %v901
      %v905 = vxor.u32 %v904, 2147483648
      %v906 = vmul.f32 %v905, 1.442695
      %v907 = vpow.pop %v906
      %v908 = vadd.f32 %v907, 1.0
      %v909 = vrcp.pop %v908
      %v910 = vmul.f32 1.0, %v909
      %v911 = vtanh.pop %v904
      %v912 = vmul.f32 %v910, %v813
      %914 = vrot.lane.b32.xlu0 %v911, 64
      %v915 = vpop.permute.xlu0 %914
      %v917 = vmul.f32 %v910, %v915
      %919 = vrot.lane.b32.xlu0 %v917, 32
      %v920 = vpop.permute.xlu0 %919
      %v922 = vadd.f32 %v912, %v920
      %v923 = vtanh.pop %v922
      %925 = vrot.lane.b32.xlu0 %v923, 64
      %v926 = vpop.permute.xlu0 %925
      %v928 = vmul.f32 %v910, %v926
      %930 = vrot.lane.b32.xlu0 %v928, 32
      %v931 = vpop.permute.xlu0 %930
      %s933 = scalar_lea.vmem %s256, %s829
      %934 = vst.msk [vmem:[%s933] sm:$0x3] %vm388, %v931
      %s935 = smul.u32 %s390, 6
      %s936 = sadd.s32 %s935, %s17
      %s937 = smul.u32 %s936, 2
      %s938 = scalar_lea.vmem %s231, %s937
      %v939 = vld [vmem:[%s938] sm:$0x3]
      %v940 = vsel %vm280, %v931, 0
      %942 = vmatprep.subr.mxu0 0.0
      %943 = vmatpush1.msra.mxu0 %v270
      %944 = vmatprep.subr.mxu0 0.0
      %945 = vmatpush1.msra.mxu0 %v271
      %946 = vmatprep.subr.mxu0 0.0
      %947 = vmatpush1.msra.mxu0 %v272
      %948 = vmatprep.subr.mxu0 0.0
      %949 = vmatpush1.msra.mxu0 %v273
      %950 = vmatprep.subr.mxu0 0.0
      %951 = vmatpush1.msra.mxu0 0.0
      %952 = vmatprep.subr.mxu0 0.0
      %953 = vmatpush1.msra.mxu0 0.0
      %954 = vmatprep.subr.mxu0 0.0
      %955 = vmatpush1.msra.mxu0 0.0
      %956 = vmatprep.subr.mxu0 0.0
      %957 = vmatpush1.msra.mxu0 0.0
      %958 = vmatprep.subr.mxu0 0.0
      %959 = vmatpush1.msra.mxu0 0.0
      %960 = vmatprep.subr.mxu0 0.0
      %961 = vmatpush1.msra.mxu0 0.0
      %962 = vmatprep.subr.mxu0 0.0
      %963 = vmatpush1.msra.mxu0 0.0
      %964 = vmatprep.subr.mxu0 0.0
      %965 = vmatpush1.msra.mxu0 0.0
      %966 = vmatprep.subr.mxu0 0.0
      %967 = vmatpush1.msra.mxu0 0.0
      %968 = vmatprep.subr.mxu0 0.0
      %969 = vmatpush1.msra.mxu0 0.0
      %970 = vmatprep.subr.mxu0 0.0
      %971 = vmatpush1.msra.mxu0 0.0
      %972 = vmatprep.subr.mxu0 0.0
      %973 = vmatpush1.msra.mxu0 0.0
      %974 = vmatprep.subr.mxu0 0.0
      %975 = vmatpush1.msra.mxu0 0.0
      %976 = vmatprep.subr.mxu0 0.0
      %977 = vmatpush1.msra.mxu0 0.0
      %978 = vmatprep.subr.mxu0 0.0
      %979 = vmatpush1.msra.mxu0 0.0
      %980 = vmatprep.subr.mxu0 0.0
      %981 = vmatpush1.msra.mxu0 0.0
      %982 = vmatprep.subr.mxu0 0.0
      %983 = vmatpush1.msra.mxu0 0.0
      %984 = vmatprep.subr.mxu0 0.0
      %985 = vmatpush1.msra.mxu0 0.0
      %986 = vmatprep.subr.mxu0 0.0
      %987 = vmatpush1.msra.mxu0 0.0
      %988 = vmatprep.subr.mxu0 0.0
      %989 = vmatpush1.msra.mxu0 0.0
      %990 = vmatprep.subr.mxu0 0.0
      %991 = vmatpush1.msra.mxu0 0.0
      %992 = vmatprep.subr.mxu0 0.0
      %993 = vmatpush1.msra.mxu0 0.0
      %994 = vmatprep.subr.mxu0 0.0
      %995 = vmatpush1.msra.mxu0 0.0
      %996 = vmatprep.subr.mxu0 0.0
      %997 = vmatpush1.msra.mxu0 0.0
      %998 = vmatprep.subr.mxu0 0.0
      %999 = vmatpush1.msra.mxu0 0.0
      %1000 = vmatprep.subr.mxu0 0.0
      %1001 = vmatpush1.msra.mxu0 0.0
      %1002 = vmatprep.subr.mxu0 0.0
      %1003 = vmatpush1.msra.mxu0 0.0
      %1004 = vmatprep.subr.mxu0 0.0
      %1005 = vmatpush1.msra.mxu0 0.0
      %1006 = vmatprep.mubr.f32.mxu0 0.0
      %1007 = vmatmul.mubr.f32.gmra.mrb[0].mxu0 %v940
      %v1008 = vpop.f32.mrb[0].mxu0
      %v1009 = vadd.f32 0.0, %v1008
      %v1010 = vpop.f32.mrb[0].mxu0
      %1011 = vdwg.mxu0
      %v1012 = vadd.f32 %v939, %v1009
      %v1013 = vxor.u32 %v1012, 2147483648
      %v1014 = vmul.f32 %v1013, 1.442695
      %v1015 = vpow.pop %v1014
      %v1016 = vadd.f32 %v1015, 1.0
      %v1017 = vrcp.pop %v1016
      %v1018 = vmul.f32 1.0, %v1017
      %v1019 = vtanh.pop %v1012
      %v1020 = vmul.f32 %v1018, %v922
      %1022 = vrot.lane.b32.xlu0 %v1019, 64
      %v1023 = vpop.permute.xlu0 %1022
      %v1025 = vmul.f32 %v1018, %v1023
      %1027 = vrot.lane.b32.xlu0 %v1025, 32
      %v1028 = vpop.permute.xlu0 %1027
      %v1030 = vadd.f32 %v1020, %v1028
      %v1031 = vtanh.pop %v1030
      %1033 = vrot.lane.b32.xlu0 %v1031, 64
      %v1034 = vpop.permute.xlu0 %1033
      %v1036 = vmul.f32 %v1018, %v1034
      %1038 = vrot.lane.b32.xlu0 %v1036, 32
      %v1039 = vpop.permute.xlu0 %1038
      %s1041 = scalar_lea.vmem %s256, %s937
      %1042 = vst.msk [vmem:[%s1041] sm:$0x3] %vm388, %v1039
      %s1043 = smul.u32 %s390, 7
      %s1044 = smul.u32 %s1043, 2
      %s1045 = scalar_lea.vmem %s231, %s1044
      %v1046 = vld [vmem:[%s1045] sm:$0x3]
      %v1047 = vsel %vm280, %v1039, 0
      %1049 = vmatprep.subr.mxu0 0.0
      %1050 = vmatpush1.msra.mxu0 %v270
      %1051 = vmatprep.subr.mxu0 0.0
      %1052 = vmatpush1.msra.mxu0 %v271
      %1053 = vmatprep.subr.mxu0 0.0
      %1054 = vmatpush1.msra.mxu0 %v272
      %1055 = vmatprep.subr.mxu0 0.0
      %1056 = vmatpush1.msra.mxu0 %v273
      %1057 = vmatprep.subr.mxu0 0.0
      %1058 = vmatpush1.msra.mxu0 0.0
      %1059 = vmatprep.subr.mxu0 0.0
      %1060 = vmatpush1.msra.mxu0 0.0
      %1061 = vmatprep.subr.mxu0 0.0
      %1062 = vmatpush1.msra.mxu0 0.0
      %1063 = vmatprep.subr.mxu0 0.0
      %1064 = vmatpush1.msra.mxu0 0.0
      %1065 = vmatprep.subr.mxu0 0.0
      %1066 = vmatpush1.msra.mxu0 0.0
      %1067 = vmatprep.subr.mxu0 0.0
      %1068 = vmatpush1.msra.mxu0 0.0
      %1069 = vmatprep.subr.mxu0 0.0
      %1070 = vmatpush1.msra.mxu0 0.0
      %1071 = vmatprep.subr.mxu0 0.0
      %1072 = vmatpush1.msra.mxu0 0.0
      %1073 = vmatprep.subr.mxu0 0.0
      %1074 = vmatpush1.msra.mxu0 0.0
      %1075 = vmatprep.subr.mxu0 0.0
      %1076 = vmatpush1.msra.mxu0 0.0
      %1077 = vmatprep.subr.mxu0 0.0
      %1078 = vmatpush1.msra.mxu0 0.0
      %1079 = vmatprep.subr.mxu0 0.0
      %1080 = vmatpush1.msra.mxu0 0.0
      %1081 = vmatprep.subr.mxu0 0.0
      %1082 = vmatpush1.msra.mxu0 0.0
      %1083 = vmatprep.subr.mxu0 0.0
      %1084 = vmatpush1.msra.mxu0 0.0
      %1085 = vmatprep.subr.mxu0 0.0
      %1086 = vmatpush1.msra.mxu0 0.0
      %1087 = vmatprep.subr.mxu0 0.0
      %1088 = vmatpush1.msra.mxu0 0.0
      %1089 = vmatprep.subr.mxu0 0.0
      %1090 = vmatpush1.msra.mxu0 0.0
      %1091 = vmatprep.subr.mxu0 0.0
      %1092 = vmatpush1.msra.mxu0 0.0
      %1093 = vmatprep.subr.mxu0 0.0
      %1094 = vmatpush1.msra.mxu0 0.0
      %1095 = vmatprep.subr.mxu0 0.0
      %1096 = vmatpush1.msra.mxu0 0.0
      %1097 = vmatprep.subr.mxu0 0.0
      %1098 = vmatpush1.msra.mxu0 0.0
      %1099 = vmatprep.subr.mxu0 0.0
      %1100 = vmatpush1.msra.mxu0 0.0
      %1101 = vmatprep.subr.mxu0 0.0
      %1102 = vmatpush1.msra.mxu0 0.0
      %1103 = vmatprep.subr.mxu0 0.0
      %1104 = vmatpush1.msra.mxu0 0.0
      %1105 = vmatprep.subr.mxu0 0.0
      %1106 = vmatpush1.msra.mxu0 0.0
      %1107 = vmatprep.subr.mxu0 0.0
      %1108 = vmatpush1.msra.mxu0 0.0
      %1109 = vmatprep.subr.mxu0 0.0
      %1110 = vmatpush1.msra.mxu0 0.0
      %1111 = vmatprep.subr.mxu0 0.0
      %1112 = vmatpush1.msra.mxu0 0.0
      %1113 = vmatprep.mubr.f32.mxu0 0.0
      %1114 = vmatmul.mubr.f32.gmra.mrb[0].mxu0 %v1047
      %v1115 = vpop.f32.mrb[0].mxu0
      %v1116 = vadd.f32 0.0, %v1115
      %v1117 = vpop.f32.mrb[0].mxu0
      %1118 = vdwg.mxu0
      %v1119 = vadd.f32 %v1046, %v1116
      %v1120 = vxor.u32 %v1119, 2147483648
      %v1121 = vmul.f32 %v1120, 1.442695
      %v1122 = vpow.pop %v1121
      %v1123 = vadd.f32 %v1122, 1.0
      %v1124 = vrcp.pop %v1123
      %v1125 = vmul.f32 1.0, %v1124
      %v1126 = vtanh.pop %v1119
      %v1127 = vmul.f32 %v1125, %v1030
      %1129 = vrot.lane.b32.xlu0 %v1126, 64
      %v1130 = vpop.permute.xlu0 %1129
      %v1132 = vmul.f32 %v1125, %v1130
      %1134 = vrot.lane.b32.xlu0 %v1132, 32
      %v1135 = vpop.permute.xlu0 %1134
      %v1137 = vadd.f32 %v1127, %v1135
      %v1138 = vtanh.pop %v1137
      %1140 = vrot.lane.b32.xlu0 %v1138, 64
      %v1141 = vpop.permute.xlu0 %1140
      %v1143 = vmul.f32 %v1125, %v1141
      %1145 = vrot.lane.b32.xlu0 %v1143, 32
      %v1146 = vpop.permute.xlu0 %1145
      %s1148 = scalar_lea.vmem %s256, %s1044
      %1149 = vst.msk [vmem:[%s1148] sm:$0x3] %vm388, %v1146
      %1150 = vst.msk [vmem:[#allocation2] sm:$0x3] %vm388, %v1146
      %1152 = vrot.lane.b32.xlu0 %v1137, 96
      %v1153 = vpop.permute.xlu0 %1152
      %1155 = vst.msk [vmem:[#allocation3] sm:$0x3] %vm388, %v1153
      %s1156 = ssub.s32 1, %s17
      %s1157 = smul.u32 %s1156, %s18
      %s1158 = ssub.s32 0, %s18
      %s1159 = smul.u32 %s17, %s1158
      %s1160 = sadd.s32 %s1157, %s1159
      %s1161 = smul.u32 8, %s1160
      %p1162 = scmp.lt.s32.totalorder %s17, 1
      %s1163 = scalar_select %p1162, %s17, 1
      %p1164 = scmp.lt.s32.totalorder %s1161, 7
      %s1165 = scalar_select %p1164, %s1161, 7
      %s1166 = smul.addr %s1163, 8
      %s1167 = sadd.s32 %s1165, %s1166
      %s1168 = smul.addr %s1167, 2
      %s1169 = scalar_lea.vmem %s2, %s1168
      // Predicated region
      $region33: #{bilstm_decoder_forward.2} parent=27 // pred_check
        %p1170 = pneg %p119
      $region34: #{bilstm_decoder_forward.2} parent=27 // pred_check_branch
        %1172 = sbr.rel (%p1170) target = $region36
      $region35: #{bilstm_decoder_forward.2} parent=27 // pred_region
        %s1173 = ssub.s32 1, %s17
        %s1174 = smul.u32 %s1173, %s18
        %s1175 = ssub.s32 0, %s18
        %s1176 = smul.u32 %s17, %s1175
        %s1177 = sadd.s32 %s1174, %s1176
        %s1178 = smul.u32 8, %s1177
      $region36: #{bilstm_decoder_forward.2} parent=27 // pred_fallthru
        _
    $region28: #{bilstm_decoder_forward.2} parent=5 // pred_fallthru
      _
    %p1179 = scmp.le.s32.totalorder 2, %s8
    // Predicated region
    $region37: #{bilstm_decoder_forward.2} parent=5 // pred_check
      %p1180 = pneg %p1179
    $region38: #{bilstm_decoder_forward.2} parent=5 // pred_check_branch
      %1182 = sbr.rel (%p1180) target = $region40
    $region39: #{bilstm_decoder_forward.2} parent=5 // pred_region
      %s1183 = ssub.s32 %s8, 2
      // Predicated region
      $region41: #{bilstm_decoder_forward.2} parent=39 // pred_check
        %p1184 = pneg %p125
      $region42: #{bilstm_decoder_forward.2} parent=39 // pred_check_branch
        %1186 = sbr.rel (%p1184) target = $region44
      $region43: #{bilstm_decoder_forward.2} parent=39 // pred_region
        %s1187 = ssub.s32 1, %s19
        %s1188 = smul.u32 %s1187, %s20
        %s1189 = ssub.s32 0, %s20
        %s1190 = smul.u32 %s19, %s1189
        %s1191 = sadd.s32 %s1188, %s1190
        %s1192 = smul.u32 8, %s1191
        %p1193 = scmp.lt.s32.totalorder %s19, 1
        %s1194 = scalar_select %p1193, %s19, 1
        %p1195 = scmp.lt.s32.totalorder %s1192, 7
        %s1196 = scalar_select %p1195, %s1192, 7
        %s1197 = smul.addr %s1194, 8
        %s1198 = sadd.s32 %s1196, %s1197
        %s1199 = smul.addr %s1198, 2
        %s1200 = scalar_lea.vmem %s2, %s1199
      $region44: #{bilstm_decoder_forward.2} parent=39 // pred_fallthru
        _
    $region40: #{bilstm_decoder_forward.2} parent=5 // pred_fallthru
      _
  $region6: #{bilstm_decoder_forward.2} parent=0 // loop_footer
    %s12 = sadd.s32 1, %s8
  $region7: #{bilstm_decoder_forward.2} parent=0 // loop_footer_branch
    %7 = sbr.rel target = $region3
  $region8: #{bilstm_decoder_forward.2} parent=0 // loop_exit
    _

</llo_original>
